<compile_context>
chip_gen: v5e
topology: v5e:2x2
jax: 0.10.0
libtpu: 0.0.40
codegen_flags: <defaults>
</compile_context>

<pallas_src>
import functools

import jax
import jax.numpy as jnp
from jax import lax
from jax.experimental import pallas as pl
from jax.experimental.pallas import tpu as pltpu

LANE = 128
SUBLANE = 8


def _round_up(x, m):
    return ((x + m - 1) // m) * m


# ---------------------------------------------------------------------------
# Pallas kernel: fused attention forward
# ---------------------------------------------------------------------------
def attention_kernel(hidden_ref, enc_ref, w_h_ref, w_e_ref, b_ref, v_ref,
                     out_ref, *, t_actual):
    """hidden: (Bb, Hp), enc: (Bb*Tp, Hp) flat -> out: (Bb, Tp) softmax over T."""
    block_b, t_pad = out_ref.shape
    h_pad = hidden_ref.shape[-1]

    # cat(hidden.repeat(T), enc) @ W_attn  ==  hidden @ W_h + enc @ W_e
    # hidden is projected once per batch row; enc feeds the MXU as a single
    # (block_b*T_pad, H_pad) @ (H_pad, H_pad) matmul with f32 accumulation.
    h_proj = jnp.dot(hidden_ref[...], w_h_ref[...],
                     preferred_element_type=jnp.float32) + b_ref[...]       # (Bb, Hp) f32
    e_proj = jnp.dot(enc_ref[...], w_e_ref[...],
                     preferred_element_type=jnp.float32)                    # (Bb*Tp, Hp) f32

    # Leading-dim split only (T_pad % 8 == 0, H_pad % 128 == 0) -> no relayout.
    energy = jnp.tanh(e_proj.reshape(block_b, t_pad, h_pad)
                      + h_proj[:, None, :])                                 # (Bb, Tp, Hp) f32
    # TODO(synk): on v6e/v7x (bf16-capable EUP) the tanh could run in bf16 to
    # double transcendental throughput once HBM is no longer the limiter.

    # v: Linear(H, 1, bias=False) -> elementwise mul + lane reduction (XLU),
    # avoiding a degenerate N=1 MXU matmul and a 1-lane store.
    scores = jnp.sum(energy * v_ref[...][None, :, :], axis=-1)              # (Bb, Tp)

    # Mask padded timesteps before the softmax so no mass leaks to padding.
    col = lax.broadcasted_iota(jnp.int32, (block_b, t_pad), 1)
    scores = jnp.where(col < t_actual, scores, jnp.float32(-1e30))

    # Numerically stable softmax over T (lane axis); reciprocal on (Bb, 1) uses
    # the EUP slot instead of a full (Bb, Tp) VPU divide.
    m = jnp.max(scores, axis=-1, keepdims=True)
    e = jnp.exp(scores - m)
    inv = pl.reciprocal(jnp.sum(e, axis=-1, keepdims=True), approx=False)
    out_ref[...] = e * inv


# ---------------------------------------------------------------------------
# Tile sizing (per-generation VMEM budget)
# ---------------------------------------------------------------------------
def _vmem_budget_bytes():
    try:
        phys = int(pltpu.get_tpu_info().vmem_capacity_bytes)
    except Exception:
        phys = 64 * 1024 * 1024          # conservative: v7x per-TensorCore VMEM
    phys = max(32 * 1024 * 1024, min(phys, 128 * 1024 * 1024))
    return (phys * 3) // 4               # leave headroom for compiler scratch


def _choose_block_b(B, t_pad, h_pad, in_bytes, vmem_budget):
    # Per batch row: double-buffered enc DMA + ~3 f32 (T_pad, H_pad)-sized temps
    # (e_proj / energy / exp) + hidden & output tiles.
    per_row = (t_pad * h_pad * (2 * in_bytes + 3 * 4)
               + t_pad * 3 * 4
               + h_pad * (2 * in_bytes + 4))
    resident = 2 * 2 * h_pad * h_pad * in_bytes + 4 * h_pad * 4   # W_h, W_e, b, v
    rows = max(SUBLANE, (vmem_budget - resident) // per_row)
    rows = int(min(rows, 512))           # diminishing returns past ~512 rows

    b8 = _round_up(B, SUBLANE)
    if b8 <= rows:
        blk = b8                          # whole batch in one tile
    elif rows >= 256:
        blk = (rows // 256) * 256         # MXU-friendly M on v6e/v7x (2x256^2)
    else:
        blk = (rows // SUBLANE) * SUBLANE

    # v7x has 2 TensorCores: prefer >= 2 "parallel" grid steps when batch allows.
    if b8 // blk < 2 and b8 >= 2 * SUBLANE:
        blk = _round_up(max(b8 // 2, SUBLANE), SUBLANE)
    return blk


# ---------------------------------------------------------------------------
# Wrapper
# ---------------------------------------------------------------------------
def attention_forward(hidden, encoder_outputs, params, *, use_bf16=False):
    """hidden: (B, H) f32, encoder_outputs: (B, T, H) f32 -> (B, T) attn weights."""
    B, T, H = encoder_outputs.shape
    assert hidden.shape == (B, H)

    h_pad = _round_up(H, LANE)            # lane-dense H (vreg / MXU width)
    t_pad = _round_up(T, LANE)            # lane-dense output store

    in_dtype = jnp.bfloat16 if use_bf16 else jnp.float32
    in_bytes = 2 if use_bf16 else 4

    vmem_budget = _vmem_budget_bytes()
    block_b = _choose_block_b(B, t_pad, h_pad, in_bytes, vmem_budget)
    b_padded = _round_up(B, block_b)
    grid = (b_padded // block_b,)

    # Zero-padding is exact: padded H lanes carry zero weights/bias/v so they
    # contribute nothing; padded T lanes are masked in-kernel; padded batch
    # rows are sliced off.
    hidden_p = jnp.zeros((b_padded, h_pad), in_dtype).at[:B, :H].set(
        hidden.astype(in_dtype))
    enc_p = jnp.zeros((b_padded, t_pad, h_pad), in_dtype).at[:B, :T, :H].set(
        encoder_outputs.astype(in_dtype))
    enc_flat = enc_p.reshape(b_padded * t_pad, h_pad)   # flatten at XLA level

    w_h = jnp.zeros((h_pad, h_pad), in_dtype).at[:H, :H].set(
        params["w_h"].astype(in_dtype))
    w_e = jnp.zeros((h_pad, h_pad), in_dtype).at[:H, :H].set(
        params["w_e"].astype(in_dtype))
    b_attn = jnp.zeros((1, h_pad), jnp.float32).at[:, :H].set(params["b_attn"])
    v_row = jnp.zeros((1, h_pad), jnp.float32).at[:, :H].set(params["v"])

    flops = (2 * b_padded * t_pad * h_pad * h_pad       # enc projection
             + 2 * b_padded * h_pad * h_pad             # hidden projection
             + 2 * b_padded * t_pad * h_pad)            # v reduction
    transcendentals = b_padded * t_pad * h_pad + b_padded * t_pad
    bytes_accessed = ((enc_flat.size + hidden_p.size + w_h.size + w_e.size) * in_bytes
                      + (b_attn.size + v_row.size + b_padded * t_pad) * 4)

    out = pl.pallas_call(
        functools.partial(attention_kernel, t_actual=T),
        out_shape=jax.ShapeDtypeStruct((b_padded, t_pad), jnp.float32),
        grid_spec=pltpu.PrefetchScalarGridSpec(
            num_scalar_prefetch=0,
            grid=grid,
            in_specs=[
                pl.BlockSpec((block_b, h_pad), lambda b: (b, 0)),           # hidden
                pl.BlockSpec((block_b * t_pad, h_pad), lambda b: (b, 0)),   # enc (flat)
                pl.BlockSpec((h_pad, h_pad), lambda b: (0, 0)),             # W_h (resident)
                pl.BlockSpec((h_pad, h_pad), lambda b: (0, 0)),             # W_e (resident)
                pl.BlockSpec((1, h_pad), lambda b: (0, 0)),                 # bias
                pl.BlockSpec((1, h_pad), lambda b: (0, 0)),                 # v row
            ],
            out_specs=pl.BlockSpec((block_b, t_pad), lambda b: (b, 0)),
        ),
        compiler_params=pltpu.CompilerParams(
            dimension_semantics=("parallel",),
            vmem_limit_bytes=int(vmem_budget)),
        cost_estimate=pl.CostEstimate(
            flops=flops,
            transcendentals=transcendentals,
            bytes_accessed=bytes_accessed),
    )(hidden_p, enc_flat, w_h, w_e, b_attn, v_row)

    # TODO(synk): for T*H too large for one (block_b, T_pad, H_pad) VMEM block, add a
    # trailing "arbitrary" grid axis over T with a scores scratch and a pl.when softmax epilogue.
    return out[:B, :T]


# ---------------------------------------------------------------------------
# Parameters (deterministic, synthetic) + pure-JAX reference
# ---------------------------------------------------------------------------
def init_attention(key, hidden_dim):
    ks = jax.random.split(key, 4)
    s = 0.1
    return {
        # attn.weight.T split along the input (2H) axis: rows [:H] multiply the
        # repeated `hidden`, rows [H:] multiply `encoder_outputs`.
        "w_h": jax.random.normal(ks[0], (hidden_dim, hidden_dim), jnp.float32) * s,
        "w_e": jax.random.normal(ks[1], (hidden_dim, hidden_dim), jnp.float32) * s,
        "b_attn": jax.random.normal(ks[2], (1, hidden_dim), jnp.float32) * s,
        # v.weight of nn.Linear(hidden_dim, 1, bias=False), stored as a row.
        "v": jax.random.normal(ks[3], (1, hidden_dim), jnp.float32) * s,
    }


def attention_reference(hidden, encoder_outputs, params):
    """Plain-JAX reference matching the PyTorch module exactly."""
    B, T, H = encoder_outputs.shape
    h_rep = jnp.broadcast_to(hidden[:, None, :], (B, T, H))
    cat = jnp.concatenate([h_rep, encoder_outputs], axis=-1)          # (B, T, 2H)
    w_cat = jnp.concatenate([params["w_h"], params["w_e"]], axis=0)   # (2H, H)
    energy = jnp.tanh(cat @ w_cat + params["b_attn"][0])              # (B, T, H)
    scores = jnp.einsum("bth,h->bt", energy, params["v"][0])          # (B, T)
    return jax.nn.softmax(scores, axis=1)


# ---------------------------------------------------------------------------
if __name__ == "__main__":
    B = 2        # batch
    T = 8        # src_len (encoder timesteps)
    H = 32       # hidden_dim

    root = jax.random.PRNGKey(0)
    k_p, k_h, k_e = jax.random.split(root, 3)

    params = init_attention(k_p, H)
    hidden = jax.random.normal(k_h, (B, H), jnp.float32)
    encoder_outputs = jax.random.normal(k_e, (B, T, H), jnp.float32)

    # f32 path, exact against the f32 reference.
    out = jax.block_until_ready(attention_forward(hidden, encoder_outputs, params))
    ref = attention_reference(hidden, encoder_outputs, params)
    assert out.shape == (B, T)
    assert bool(jnp.all(jnp.isfinite(out)))
    assert bool(jnp.allclose(jnp.sum(out, axis=1), 1.0, atol=1e-5))
    assert bool(jnp.allclose(out, ref, atol=1e-5, rtol=1e-5))

    # Larger batch: exercises the multi-step "parallel" grid (>=2 tiles for
    # v7x megacore) and the bf16 HBM-traffic-halving input path (relaxed
    # tolerance vs the f32 reference; softmax itself stays f32 in-kernel).
    B2 = 24
    k_h2, k_e2 = jax.random.split(jax.random.PRNGKey(1), 2)
    hidden2 = jax.random.normal(k_h2, (B2, H), jnp.float32)
    enc2 = jax.random.normal(k_e2, (B2, T, H), jnp.float32)
    out2 = jax.block_until_ready(
        attention_forward(hidden2, enc2, params, use_bf16=True))
    ref2 = attention_reference(hidden2, enc2, params)
    assert out2.shape == (B2, T)
    assert bool(jnp.all(jnp.isfinite(out2)))
    assert bool(jnp.allclose(jnp.sum(out2, axis=1), 1.0, atol=1e-3))
    assert bool(jnp.allclose(out2, ref2, atol=2e-2, rtol=2e-2))

    print("KERNEL_OK")
</pallas_src>

<mosaic_0001>
module attributes {stable_mosaic.version = 11 : i64} {
  func.func @attention_kernel(%arg0: i32, %arg1: memref<8x128xf32, #tpu.memory_space<vmem>>, %arg2: memref<1024x128xf32, #tpu.memory_space<vmem>>, %arg3: memref<128x128xf32, #tpu.memory_space<vmem>>, %arg4: memref<128x128xf32, #tpu.memory_space<vmem>>, %arg5: memref<1x128xf32, #tpu.memory_space<vmem>>, %arg6: memref<1x128xf32, #tpu.memory_space<vmem>>, %arg7: memref<8x128xf32, #tpu.memory_space<vmem>>) attributes {dimension_semantics = [#tpu.dimension_semantics<parallel>], iteration_bounds = array<i64: 1>, scalar_prefetch = 0 : i64, scratch_operands = 0 : i64, tpu.core_type = #tpu.core_type<tc>, window_params = [{transform_indices = @transform_0, window_bounds = array<i64: 8, 128>}, {transform_indices = @transform_1, window_bounds = array<i64: 1024, 128>}, {pipeline_mode = #tpu.pipeline_mode<synchronous>, transform_indices = @transform_2, window_bounds = array<i64: 128, 128>}, {pipeline_mode = #tpu.pipeline_mode<synchronous>, transform_indices = @transform_3, window_bounds = array<i64: 128, 128>}, {pipeline_mode = #tpu.pipeline_mode<synchronous>, transform_indices = @transform_4, window_bounds = array<i64: 1, 128>}, {pipeline_mode = #tpu.pipeline_mode<synchronous>, transform_indices = @transform_5, window_bounds = array<i64: 1, 128>}, {transform_indices = @transform_6, window_bounds = array<i64: 8, 128>}]} {
    %c0 = arith.constant 0 : index
    %c0_0 = arith.constant 0 : index
    %0 = vector.load %arg1[%c0, %c0_0] : memref<8x128xf32, #tpu.memory_space<vmem>>, vector<8x128xf32>
    %c0_1 = arith.constant 0 : index
    %c0_2 = arith.constant 0 : index
    %1 = vector.load %arg3[%c0_1, %c0_2] : memref<128x128xf32, #tpu.memory_space<vmem>>, vector<128x128xf32>
    %cst = arith.constant dense<0.000000e+00> : vector<8x128xf32>
    %2 = tpu.matmul %0, %1, %cst {dimension_numbers = #tpu.dot_dimension_numbers<[1], [0], [0], [1], [0, 0, 1, 1], [], []>} : vector<8x128xf32>, vector<128x128xf32>, vector<8x128xf32> -> vector<8x128xf32>
    %c0_3 = arith.constant 0 : index
    %c0_4 = arith.constant 0 : index
    %3 = vector.load %arg5[%c0_3, %c0_4] : memref<1x128xf32, #tpu.memory_space<vmem>>, vector<1x128xf32>
    %4 = vector.broadcast %3 : vector<1x128xf32> to vector<8x128xf32>
    %5 = arith.addf %2, %4 : vector<8x128xf32>
    %c0_5 = arith.constant 0 : index
    %c0_6 = arith.constant 0 : index
    %6 = vector.load %arg2[%c0_5, %c0_6] : memref<1024x128xf32, #tpu.memory_space<vmem>>, vector<1024x128xf32>
    %c0_7 = arith.constant 0 : index
    %c0_8 = arith.constant 0 : index
    %7 = vector.load %arg4[%c0_7, %c0_8] : memref<128x128xf32, #tpu.memory_space<vmem>>, vector<128x128xf32>
    %cst_9 = arith.constant dense<0.000000e+00> : vector<1024x128xf32>
    %8 = tpu.matmul %6, %7, %cst_9 {dimension_numbers = #tpu.dot_dimension_numbers<[1], [0], [0], [1], [0, 0, 1, 1], [], []>} : vector<1024x128xf32>, vector<128x128xf32>, vector<1024x128xf32> -> vector<1024x128xf32>
    %9 = vector.shape_cast %8 : vector<1024x128xf32> to vector<8x128x128xf32>
    %10 = vector.shape_cast %5 : vector<8x128xf32> to vector<8x1x128xf32>
    %11 = vector.broadcast %10 : vector<8x1x128xf32> to vector<8x128x128xf32>
    %12 = arith.addf %9, %11 : vector<8x128x128xf32>
    %13 = math.tanh %12 : vector<8x128x128xf32>
    %c0_10 = arith.constant 0 : index
    %c0_11 = arith.constant 0 : index
    %14 = vector.load %arg6[%c0_10, %c0_11] : memref<1x128xf32, #tpu.memory_space<vmem>>, vector<1x128xf32>
    %15 = vector.shape_cast %14 : vector<1x128xf32> to vector<1x1x128xf32>
    %16 = vector.broadcast %15 : vector<1x1x128xf32> to vector<8x128x128xf32>
    %17 = arith.mulf %13, %16 : vector<8x128x128xf32>
    %cst_12 = arith.constant dense<0.000000e+00> : vector<8x128xf32>
    %18 = vector.multi_reduction <add>, %17, %cst_12 [2] : vector<8x128x128xf32> to vector<8x128xf32>
    %19 = tpu.iota {dimensions = array<i32: 1>} : vector<8x128xi32>
    %c8_i32 = arith.constant 8 : i32
    %20 = vector.broadcast %c8_i32 : i32 to vector<8x128xi32>
    %21 = arith.cmpi slt, %19, %20 : vector<8x128xi32>
    %cst_13 = arith.constant -1.000000e+30 : f32
    %22 = vector.broadcast %cst_13 : f32 to vector<8x128xf32>
    %23 = arith.select %21, %18, %22 : vector<8x128xi1>, vector<8x128xf32>
    %cst_14 = arith.constant dense<0xFF800000> : vector<8xf32>
    %24 = vector.multi_reduction <maximumf>, %23, %cst_14 [1] : vector<8x128xf32> to vector<8xf32>
    %25 = vector.shape_cast %24 : vector<8xf32> to vector<8x1xf32>
    %26 = vector.broadcast %25 : vector<8x1xf32> to vector<8x128xf32>
    %27 = arith.subf %23, %26 : vector<8x128xf32>
    %28 = math.exp %27 : vector<8x128xf32>
    %cst_15 = arith.constant dense<0.000000e+00> : vector<8xf32>
    %29 = vector.multi_reduction <add>, %28, %cst_15 [1] : vector<8x128xf32> to vector<8xf32>
    %30 = vector.shape_cast %29 : vector<8xf32> to vector<8x1xf32>
    %31 = tpu.reciprocal %30 : vector<8x1xf32> -> vector<8x1xf32>
    %32 = vector.broadcast %31 : vector<8x1xf32> to vector<8x128xf32>
    %33 = arith.mulf %28, %32 : vector<8x128xf32>
    %c0_16 = arith.constant 0 : index
    %c0_17 = arith.constant 0 : index
    %34 = vector.load %arg7[%c0_16, %c0_17] : memref<8x128xf32, #tpu.memory_space<vmem>>, vector<8x128xf32>
    tpu.vector_store %arg7[%c0_16, %c0_17], %33 {strides = array<i32>} : memref<8x128xf32, #tpu.memory_space<vmem>>, vector<8x128xf32>,
    return
  }
  func.func @transform_0(%arg0: i32) -> (i32, i32) {
    %c0_i32 = arith.constant 0 : i32
    %c0_i32_0 = arith.constant 0 : i32
    return %arg0, %c0_i32 : i32, i32
  }
  func.func @transform_1(%arg0: i32) -> (i32, i32) {
    %c0_i32 = arith.constant 0 : i32
    %c0_i32_0 = arith.constant 0 : i32
    return %arg0, %c0_i32 : i32, i32
  }
  func.func @transform_2(%arg0: i32) -> (i32, i32) {
    %c0_i32 = arith.constant 0 : i32
    %c0_i32_0 = arith.constant 0 : i32
    %c0_i32_1 = arith.constant 0 : i32
    return %c0_i32, %c0_i32_0 : i32, i32
  }
  func.func @transform_3(%arg0: i32) -> (i32, i32) {
    %c0_i32 = arith.constant 0 : i32
    %c0_i32_0 = arith.constant 0 : i32
    %c0_i32_1 = arith.constant 0 : i32
    return %c0_i32, %c0_i32_0 : i32, i32
  }
  func.func @transform_4(%arg0: i32) -> (i32, i32) {
    %c0_i32 = arith.constant 0 : i32
    %c0_i32_0 = arith.constant 0 : i32
    %c0_i32_1 = arith.constant 0 : i32
    return %c0_i32, %c0_i32_0 : i32, i32
  }
  func.func @transform_5(%arg0: i32) -> (i32, i32) {
    %c0_i32 = arith.constant 0 : i32
    %c0_i32_0 = arith.constant 0 : i32
    %c0_i32_1 = arith.constant 0 : i32
    return %c0_i32, %c0_i32_0 : i32, i32
  }
  func.func @transform_6(%arg0: i32) -> (i32, i32) {
    %c0_i32 = arith.constant 0 : i32
    %c0_i32_0 = arith.constant 0 : i32
    return %arg0, %c0_i32 : i32, i32
  }
}

</mosaic_0001>

<llo_original>
// kernel: tpu_custom_call.1
$region0: #{tpu_custom_call.1}
  #allocation0 [shape = 'u32[]', space=smem, size = 0x4, offset = 0x4, fixed_abs, tag = 'smem constant byte address 0x4 - core index']
  #allocation1 [shape = 'u32[72,128]{1,0:T(1,128)}', space=vmem, size = 0x9000, scoped, tag = 'internal scratch']
  %s0 = inlined_call_operand.hbm [shape: f32[8,128], index: 0, kind: input, shape index: {}]
  %s1 = inlined_call_operand.hbm [shape: f32[1024,128], index: 1, kind: input, shape index: {}]
  %s2 = inlined_call_operand.hbm [shape: f32[128,128], index: 2, kind: input, shape index: {}]
  %s3 = inlined_call_operand.hbm [shape: f32[128,128], index: 3, kind: input, shape index: {}]
  %s4 = inlined_call_operand.vmem [shape: f32[1,128], index: 4, kind: input, shape index: {}]
  %s5 = inlined_call_operand.vmem [shape: f32[1,128], index: 5, kind: input, shape index: {}]
  %s6 = inlined_call_operand.hbm [shape: f32[8,128], index: 6, kind: output, shape index: {}]
  %s7 = sld [smem:[#allocation0]]
  $region50: #{tpu_custom_call.1} parent=0
    _
  %s9 = ssub.s32 1, %s7
  %s10 = scalar_select 0, %s9, %s7
  $region1: #{tpu_custom_call.1} parent=0
    #allocation2 [shape = 'u8[4096]{0}', space=vmem, size = 0x1000, scoped, tag = 'input window, operand 0, single buffered']
    #allocation3 [shape = 's32[1]{0}', space=sflag, size = 0x4, scoped, tag = 'scoped memory for tpu_custom_call.1']
    #allocation4 [shape = 's32[1]{0}', space=sflag, size = 0x4, scoped, tag = 'scoped memory for tpu_custom_call.1']
    #allocation5 [shape = 'u8[524288]{0}', space=vmem, size = 0x80000, scoped, tag = 'input window, operand 1, single buffered']
    #allocation6 [shape = 's32[1]{0}', space=sflag, size = 0x4, scoped, tag = 'scoped memory for tpu_custom_call.1']
    #allocation7 [shape = 'u8[65536]{0}', space=vmem, size = 0x10000, scoped, tag = 'input window, operand 2, single buffered']
    #allocation8 [shape = 'u8[65536]{0}', space=vmem, size = 0x10000, scoped, tag = 'input window, operand 3, single buffered']
    #allocation9 [shape = 's32[1]{0}', space=sflag, size = 0x4, scoped, tag = 'scoped memory for tpu_custom_call.1']
    #allocation10 [shape = 'u8[4096]{0}', space=vmem, size = 0x1000, scoped, tag = 'output window, operand 0, single buffered']
    %11 = vsyncpa [#allocation3], 0
    %12 = vsyncpa [#allocation6], 0
    %13 = vsyncpa [#allocation9], 0
    %14 = vsyncpa [#allocation4], 0
    // Predicated region
    $region2: #{tpu_custom_call.1} parent=1 // pred_check
      _
    $region3: #{tpu_custom_call.1} parent=1 // pred_check_branch
      %16 = sbr.rel (0) target = $region5
    $region4: #{tpu_custom_call.1} parent=1 // pred_region
      %18 = vsyncadd [#allocation3], 0
      %s20 = sshll.u32 %s0, 4
      %s21 = int_to_ptr.hbm [resolvable:$true] %s20
      %s22 = sshll.u32 [#allocation2], 4
      %s23 = int_to_ptr.vmem [resolvable:$true] %s22
      %25 = dma.hbm_to_vmem [thread:$0]  %s21, 128, %s23, [#allocation3]
    $region5: #{tpu_custom_call.1} parent=1 // pred_fallthru
      _
    // Predicated region
    $region6: #{tpu_custom_call.1} parent=1 // pred_check
      _
    $region7: #{tpu_custom_call.1} parent=1 // pred_check_branch
      %27 = sbr.rel (0) target = $region9
    $region8: #{tpu_custom_call.1} parent=1 // pred_region
      %29 = vsyncadd [#allocation6], 0
      %s30 = sshll.u32 %s1, 4
      %s31 = int_to_ptr.hbm [resolvable:$true] %s30
      %s32 = sshll.u32 [#allocation5], 4
      %s33 = int_to_ptr.vmem [resolvable:$true] %s32
      %38 = dma.hbm_to_vmem [thread:$0]  %s31, 16384, %s33, [#allocation6], 128, 128, 8
    $region9: #{tpu_custom_call.1} parent=1 // pred_fallthru
      _
    // Predicated region
    $region10: #{tpu_custom_call.1} parent=1 // pred_check
      _
    $region11: #{tpu_custom_call.1} parent=1 // pred_check_branch
      %40 = sbr.rel (0) target = $region13
    $region12: #{tpu_custom_call.1} parent=1 // pred_region
      %42 = vsyncadd [#allocation6], 0
      %s43 = sshll.u32 %s2, 4
      %s44 = int_to_ptr.hbm [resolvable:$true] %s43
      %s45 = sshll.u32 [#allocation7], 4
      %s46 = int_to_ptr.vmem [resolvable:$true] %s45
      %51 = dma.hbm_to_vmem [thread:$0]  %s44, 2048, %s46, [#allocation6], 128, 128, 8
    $region13: #{tpu_custom_call.1} parent=1 // pred_fallthru
      _
    // Predicated region
    $region14: #{tpu_custom_call.1} parent=1 // pred_check
      _
    $region15: #{tpu_custom_call.1} parent=1 // pred_check_branch
      %53 = sbr.rel (0) target = $region17
    $region16: #{tpu_custom_call.1} parent=1 // pred_region
      %55 = vsyncadd [#allocation9], 0
      %s56 = sshll.u32 %s3, 4
      %s57 = int_to_ptr.hbm [resolvable:$true] %s56
      %s58 = sshll.u32 [#allocation8], 4
      %s59 = int_to_ptr.vmem [resolvable:$true] %s58
      %64 = dma.hbm_to_vmem [thread:$0]  %s57, 2048, %s59, [#allocation9], 128, 128, 8
    $region17: #{tpu_custom_call.1} parent=1 // pred_fallthru
      _
    // Predicated region
    $region18: #{tpu_custom_call.1} parent=1 // pred_check
      _
    $region19: #{tpu_custom_call.1} parent=1 // pred_check_branch
      %66 = sbr.rel (0) target = $region21
    $region20: #{tpu_custom_call.1} parent=1 // pred_region
      _
    $region21: #{tpu_custom_call.1} parent=1 // pred_fallthru
      _
    // Predicated region
    $region22: #{tpu_custom_call.1} parent=1 // pred_check
      _
    $region23: #{tpu_custom_call.1} parent=1 // pred_check_branch
      %68 = sbr.rel (0) target = $region25
    $region24: #{tpu_custom_call.1} parent=1 // pred_region
      _
    $region25: #{tpu_custom_call.1} parent=1 // pred_fallthru
      _
    // Predicated region
    $region26: #{tpu_custom_call.1} parent=1 // pred_check
      _
    $region27: #{tpu_custom_call.1} parent=1 // pred_check_branch
      %70 = sbr.rel (0) target = $region29
    $region28: #{tpu_custom_call.1} parent=1 // pred_region
      %72 = dma.done [#allocation3], 128
    $region29: #{tpu_custom_call.1} parent=1 // pred_fallthru
      _
    // Predicated region
    $region30: #{tpu_custom_call.1} parent=1 // pred_check
      _
    $region31: #{tpu_custom_call.1} parent=1 // pred_check_branch
      %74 = sbr.rel (0) target = $region33
    $region32: #{tpu_custom_call.1} parent=1 // pred_region
      %76 = dma.done [#allocation6], 16384
    $region33: #{tpu_custom_call.1} parent=1 // pred_fallthru
      _
    // Predicated region
    $region34: #{tpu_custom_call.1} parent=1 // pred_check
      _
    $region35: #{tpu_custom_call.1} parent=1 // pred_check_branch
      %78 = sbr.rel (0) target = $region37
    $region36: #{tpu_custom_call.1} parent=1 // pred_region
      %80 = dma.done [#allocation6], 2048
    $region37: #{tpu_custom_call.1} parent=1 // pred_fallthru
      _
    // Predicated region
    $region38: #{tpu_custom_call.1} parent=1 // pred_check
      _
    $region39: #{tpu_custom_call.1} parent=1 // pred_check_branch
      %82 = sbr.rel (0) target = $region41
    $region40: #{tpu_custom_call.1} parent=1 // pred_region
      %84 = dma.done [#allocation9], 2048
    $region41: #{tpu_custom_call.1} parent=1 // pred_fallthru
      _
    %v85 = vld [vmem:[#allocation2] sm:$0xff]
    %v86 = vld [vmem:[#allocation7] sm:$0xff]
    %v87 = vld [vmem:[#allocation7 + $0x8] sm:$0xff]
    %v88 = vld [vmem:[#allocation7 + $0x10] sm:$0xff]
    %v89 = vld [vmem:[#allocation7 + $0x18] sm:$0xff]
    %v90 = vld [vmem:[#allocation7 + $0x20] sm:$0xff]
    %v91 = vld [vmem:[#allocation7 + $0x28] sm:$0xff]
    %v92 = vld [vmem:[#allocation7 + $0x30] sm:$0xff]
    %v93 = vld [vmem:[#allocation7 + $0x38] sm:$0xff]
    %v94 = vld [vmem:[#allocation7 + $0x40] sm:$0xff]
    %v95 = vld [vmem:[#allocation7 + $0x48] sm:$0xff]
    %v96 = vld [vmem:[#allocation7 + $0x50] sm:$0xff]
    %v97 = vld [vmem:[#allocation7 + $0x58] sm:$0xff]
    %v98 = vld [vmem:[#allocation7 + $0x60] sm:$0xff]
    %v99 = vld [vmem:[#allocation7 + $0x68] sm:$0xff]
    %v100 = vld [vmem:[#allocation7 + $0x70] sm:$0xff]
    %v101 = vld [vmem:[#allocation7 + $0x78] sm:$0xff]
    %v102 = vld [vmem:[%s4] sm:$0x1]
    %v104 = vperm.slane %v102, 0
    %106 = vmatpush.msra.mxu0 %v101
    %107 = vmatpush.msra.mxu0 %v100
    %108 = vmatpush.msra.mxu0 %v99
    %109 = vmatpush.msra.mxu0 %v98
    %110 = vmatpush.msra.mxu0 %v97
    %111 = vmatpush.msra.mxu0 %v96
    %112 = vmatpush.msra.mxu0 %v95
    %113 = vmatpush.msra.mxu0 %v94
    %114 = vmatpush.msra.mxu0 %v93
    %115 = vmatpush.msra.mxu0 %v92
    %116 = vmatpush.msra.mxu0 %v91
    %117 = vmatpush.msra.mxu0 %v90
    %118 = vmatpush.msra.mxu0 %v89
    %119 = vmatpush.msra.mxu0 %v88
    %120 = vmatpush.msra.mxu0 %v87
    %121 = vmatpush.msra.mxu0 %v86
    %122 = vmatmul.f32.gmra.mxu0 %v85
    %v123 = vpop.f32.mrf.mxu0
    %v124 = vadd.f32 %v104, %v123
    %125 = vdwg.mxu0
    %v126 = vld [vmem:[#allocation5] sm:$0xff]
    %v127 = vld [vmem:[#allocation5 + $0x8] sm:$0xff]
    %v128 = vld [vmem:[#allocation5 + $0x10] sm:$0xff]
    %v129 = vld [vmem:[#allocation5 + $0x18] sm:$0xff]
    %v130 = vld [vmem:[#allocation5 + $0x20] sm:$0xff]
    %v131 = vld [vmem:[#allocation5 + $0x28] sm:$0xff]
    %v132 = vld [vmem:[#allocation5 + $0x30] sm:$0xff]
    %v133 = vld [vmem:[#allocation5 + $0x38] sm:$0xff]
    %v134 = vld [vmem:[#allocation5 + $0x40] sm:$0xff]
    %v135 = vld [vmem:[#allocation5 + $0x48] sm:$0xff]
    %v136 = vld [vmem:[#allocation5 + $0x50] sm:$0xff]
    %v137 = vld [vmem:[#allocation5 + $0x58] sm:$0xff]
    %v138 = vld [vmem:[#allocation5 + $0x60] sm:$0xff]
    %v139 = vld [vmem:[#allocation5 + $0x68] sm:$0xff]
    %v140 = vld [vmem:[#allocation5 + $0x70] sm:$0xff]
    %v141 = vld [vmem:[#allocation5 + $0x78] sm:$0xff]
    %v142 = vld [vmem:[#allocation5 + $0x80] sm:$0xff]
    %v143 = vld [vmem:[#allocation5 + $0x88] sm:$0xff]
    %v144 = vld [vmem:[#allocation5 + $0x90] sm:$0xff]
    %v145 = vld [vmem:[#allocation5 + $0x98] sm:$0xff]
    %v146 = vld [vmem:[#allocation5 + $0xa0] sm:$0xff]
    %v147 = vld [vmem:[#allocation5 + $0xa8] sm:$0xff]
    %v148 = vld [vmem:[#allocation5 + $0xb0] sm:$0xff]
    %v149 = vld [vmem:[#allocation5 + $0xb8] sm:$0xff]
    %v150 = vld [vmem:[#allocation5 + $0xc0] sm:$0xff]
    %v151 = vld [vmem:[#allocation5 + $0xc8] sm:$0xff]
    %v152 = vld [vmem:[#allocation5 + $0xd0] sm:$0xff]
    %v153 = vld [vmem:[#allocation5 + $0xd8] sm:$0xff]
    %v154 = vld [vmem:[#allocation5 + $0xe0] sm:$0xff]
    %v155 = vld [vmem:[#allocation5 + $0xe8] sm:$0xff]
    %v156 = vld [vmem:[#allocation5 + $0xf0] sm:$0xff]
    %v157 = vld [vmem:[#allocation5 + $0xf8] sm:$0xff]
    %v158 = vld [vmem:[#allocation5 + $0x100] sm:$0xff]
    %v159 = vld [vmem:[#allocation5 + $0x108] sm:$0xff]
    %v160 = vld [vmem:[#allocation5 + $0x110] sm:$0xff]
    %v161 = vld [vmem:[#allocation5 + $0x118] sm:$0xff]
    %v162 = vld [vmem:[#allocation5 + $0x120] sm:$0xff]
    %v163 = vld [vmem:[#allocation5 + $0x128] sm:$0xff]
    %v164 = vld [vmem:[#allocation5 + $0x130] sm:$0xff]
    %v165 = vld [vmem:[#allocation5 + $0x138] sm:$0xff]
    %v166 = vld [vmem:[#allocation5 + $0x140] sm:$0xff]
    %v167 = vld [vmem:[#allocation5 + $0x148] sm:$0xff]
    %v168 = vld [vmem:[#allocation5 + $0x150] sm:$0xff]
    %v169 = vld [vmem:[#allocation5 + $0x158] sm:$0xff]
    %v170 = vld [vmem:[#allocation5 + $0x160] sm:$0xff]
    %v171 = vld [vmem:[#allocation5 + $0x168] sm:$0xff]
    %v172 = vld [vmem:[#allocation5 + $0x170] sm:$0xff]
    %v173 = vld [vmem:[#allocation5 + $0x178] sm:$0xff]
    %v174 = vld [vmem:[#allocation5 + $0x180] sm:$0xff]
    %v175 = vld [vmem:[#allocation5 + $0x188] sm:$0xff]
    %v176 = vld [vmem:[#allocation5 + $0x190] sm:$0xff]
    %v177 = vld [vmem:[#allocation5 + $0x198] sm:$0xff]
    %v178 = vld [vmem:[#allocation5 + $0x1a0] sm:$0xff]
    %v179 = vld [vmem:[#allocation5 + $0x1a8] sm:$0xff]
    %v180 = vld [vmem:[#allocation5 + $0x1b0] sm:$0xff]
    %v181 = vld [vmem:[#allocation5 + $0x1b8] sm:$0xff]
    %v182 = vld [vmem:[#allocation5 + $0x1c0] sm:$0xff]
    %v183 = vld [vmem:[#allocation5 + $0x1c8] sm:$0xff]
    %v184 = vld [vmem:[#allocation5 + $0x1d0] sm:$0xff]
    %v185 = vld [vmem:[#allocation5 + $0x1d8] sm:$0xff]
    %v186 = vld [vmem:[#allocation5 + $0x1e0] sm:$0xff]
    %v187 = vld [vmem:[#allocation5 + $0x1e8] sm:$0xff]
    %v188 = vld [vmem:[#allocation5 + $0x1f0] sm:$0xff]
    %v189 = vld [vmem:[#allocation5 + $0x1f8] sm:$0xff]
    %v190 = vld [vmem:[#allocation5 + $0x200] sm:$0xff]
    %v191 = vld [vmem:[#allocation5 + $0x208] sm:$0xff]
    %v192 = vld [vmem:[#allocation5 + $0x210] sm:$0xff]
    %v193 = vld [vmem:[#allocation5 + $0x218] sm:$0xff]
    %v194 = vld [vmem:[#allocation5 + $0x220] sm:$0xff]
    %v195 = vld [vmem:[#allocation5 + $0x228] sm:$0xff]
    %v196 = vld [vmem:[#allocation5 + $0x230] sm:$0xff]
    %v197 = vld [vmem:[#allocation5 + $0x238] sm:$0xff]
    %v198 = vld [vmem:[#allocation5 + $0x240] sm:$0xff]
    %v199 = vld [vmem:[#allocation5 + $0x248] sm:$0xff]
    %v200 = vld [vmem:[#allocation5 + $0x250] sm:$0xff]
    %v201 = vld [vmem:[#allocation5 + $0x258] sm:$0xff]
    %v202 = vld [vmem:[#allocation5 + $0x260] sm:$0xff]
    %v203 = vld [vmem:[#allocation5 + $0x268] sm:$0xff]
    %v204 = vld [vmem:[#allocation5 + $0x270] sm:$0xff]
    %v205 = vld [vmem:[#allocation5 + $0x278] sm:$0xff]
    %v206 = vld [vmem:[#allocation5 + $0x280] sm:$0xff]
    %v207 = vld [vmem:[#allocation5 + $0x288] sm:$0xff]
    %v208 = vld [vmem:[#allocation5 + $0x290] sm:$0xff]
    %v209 = vld [vmem:[#allocation5 + $0x298] sm:$0xff]
    %v210 = vld [vmem:[#allocation5 + $0x2a0] sm:$0xff]
    %v211 = vld [vmem:[#allocation5 + $0x2a8] sm:$0xff]
    %v212 = vld [vmem:[#allocation5 + $0x2b0] sm:$0xff]
    %v213 = vld [vmem:[#allocation5 + $0x2b8] sm:$0xff]
    %v214 = vld [vmem:[#allocation5 + $0x2c0] sm:$0xff]
    %v215 = vld [vmem:[#allocation5 + $0x2c8] sm:$0xff]
    %v216 = vld [vmem:[#allocation5 + $0x2d0] sm:$0xff]
    %v217 = vld [vmem:[#allocation5 + $0x2d8] sm:$0xff]
    %v218 = vld [vmem:[#allocation5 + $0x2e0] sm:$0xff]
    %v219 = vld [vmem:[#allocation5 + $0x2e8] sm:$0xff]
    %v220 = vld [vmem:[#allocation5 + $0x2f0] sm:$0xff]
    %v221 = vld [vmem:[#allocation5 + $0x2f8] sm:$0xff]
    %v222 = vld [vmem:[#allocation5 + $0x300] sm:$0xff]
    %v223 = vld [vmem:[#allocation5 + $0x308] sm:$0xff]
    %v224 = vld [vmem:[#allocation5 + $0x310] sm:$0xff]
    %v225 = vld [vmem:[#allocation5 + $0x318] sm:$0xff]
    %v226 = vld [vmem:[#allocation5 + $0x320] sm:$0xff]
    %v227 = vld [vmem:[#allocation5 + $0x328] sm:$0xff]
    %v228 = vld [vmem:[#allocation5 + $0x330] sm:$0xff]
    %v229 = vld [vmem:[#allocation5 + $0x338] sm:$0xff]
    %v230 = vld [vmem:[#allocation5 + $0x340] sm:$0xff]
    %v231 = vld [vmem:[#allocation5 + $0x348] sm:$0xff]
    %v232 = vld [vmem:[#allocation5 + $0x350] sm:$0xff]
    %v233 = vld [vmem:[#allocation5 + $0x358] sm:$0xff]
    %v234 = vld [vmem:[#allocation5 + $0x360] sm:$0xff]
    %v235 = vld [vmem:[#allocation5 + $0x368] sm:$0xff]
    %v236 = vld [vmem:[#allocation5 + $0x370] sm:$0xff]
    %v237 = vld [vmem:[#allocation5 + $0x378] sm:$0xff]
    %v238 = vld [vmem:[#allocation5 + $0x380] sm:$0xff]
    %v239 = vld [vmem:[#allocation5 + $0x388] sm:$0xff]
    %v240 = vld [vmem:[#allocation5 + $0x390] sm:$0xff]
    %v241 = vld [vmem:[#allocation5 + $0x398] sm:$0xff]
    %v242 = vld [vmem:[#allocation5 + $0x3a0] sm:$0xff]
    %v243 = vld [vmem:[#allocation5 + $0x3a8] sm:$0xff]
    %v244 = vld [vmem:[#allocation5 + $0x3b0] sm:$0xff]
    %v245 = vld [vmem:[#allocation5 + $0x3b8] sm:$0xff]
    %v246 = vld [vmem:[#allocation5 + $0x3c0] sm:$0xff]
    %v247 = vld [vmem:[#allocation5 + $0x3c8] sm:$0xff]
    %v248 = vld [vmem:[#allocation5 + $0x3d0] sm:$0xff]
    %v249 = vld [vmem:[#allocation5 + $0x3d8] sm:$0xff]
    %v250 = vld [vmem:[#allocation5 + $0x3e0] sm:$0xff]
    %v251 = vld [vmem:[#allocation5 + $0x3e8] sm:$0xff]
    %v252 = vld [vmem:[#allocation5 + $0x3f0] sm:$0xff]
    %v253 = vld [vmem:[#allocation5 + $0x3f8] sm:$0xff]
    %v254 = vld [vmem:[#allocation8] sm:$0xff]
    %v255 = vld [vmem:[#allocation8 + $0x8] sm:$0xff]
    %v256 = vld [vmem:[#allocation8 + $0x10] sm:$0xff]
    %v257 = vld [vmem:[#allocation8 + $0x18] sm:$0xff]
    %v258 = vld [vmem:[#allocation8 + $0x20] sm:$0xff]
    %v259 = vld [vmem:[#allocation8 + $0x28] sm:$0xff]
    %v260 = vld [vmem:[#allocation8 + $0x30] sm:$0xff]
    %v261 = vld [vmem:[#allocation8 + $0x38] sm:$0xff]
    %v262 = vld [vmem:[#allocation8 + $0x40] sm:$0xff]
    %v263 = vld [vmem:[#allocation8 + $0x48] sm:$0xff]
    %v264 = vld [vmem:[#allocation8 + $0x50] sm:$0xff]
    %v265 = vld [vmem:[#allocation8 + $0x58] sm:$0xff]
    %v266 = vld [vmem:[#allocation8 + $0x60] sm:$0xff]
    %v267 = vld [vmem:[#allocation8 + $0x68] sm:$0xff]
    %v268 = vld [vmem:[#allocation8 + $0x70] sm:$0xff]
    %v269 = vld [vmem:[#allocation8 + $0x78] sm:$0xff]
    %270 = vmatpush.msra.mxu0 %v269
    %271 = vmatpush.msra.mxu0 %v268
    %272 = vmatpush.msra.mxu0 %v267
    %273 = vmatpush.msra.mxu0 %v266
    %274 = vmatpush.msra.mxu0 %v265
    %275 = vmatpush.msra.mxu0 %v264
    %276 = vmatpush.msra.mxu0 %v263
    %277 = vmatpush.msra.mxu0 %v262
    %278 = vmatpush.msra.mxu0 %v261
    %279 = vmatpush.msra.mxu0 %v260
    %280 = vmatpush.msra.mxu0 %v259
    %281 = vmatpush.msra.mxu0 %v258
    %282 = vmatpush.msra.mxu0 %v257
    %283 = vmatpush.msra.mxu0 %v256
    %284 = vmatpush.msra.mxu0 %v255
    %285 = vmatpush.msra.mxu0 %v254
    %286 = vmatmul.f32.gmra.mxu0 %v126
    %v287 = vpop.f32.mrf.mxu0
    %v288 = vadd.f32 0.0, %v287
    %289 = vmatmul.f32.gmra.mxu0 %v127
    %v290 = vpop.f32.mrf.mxu0
    %v291 = vadd.f32 0.0, %v290
    %292 = vmatmul.f32.gmra.mxu0 %v128
    %v293 = vpop.f32.mrf.mxu0
    %v294 = vadd.f32 0.0, %v293
    %295 = vmatmul.f32.gmra.mxu0 %v129
    %v296 = vpop.f32.mrf.mxu0
    %v297 = vadd.f32 0.0, %v296
    %298 = vmatmul.f32.gmra.mxu0 %v130
    %v299 = vpop.f32.mrf.mxu0
    %v300 = vadd.f32 0.0, %v299
    %301 = vmatmul.f32.gmra.mxu0 %v131
    %v302 = vpop.f32.mrf.mxu0
    %v303 = vadd.f32 0.0, %v302
    %304 = vmatmul.f32.gmra.mxu0 %v132
    %v305 = vpop.f32.mrf.mxu0
    %v306 = vadd.f32 0.0, %v305
    %307 = vmatmul.f32.gmra.mxu0 %v133
    %v308 = vpop.f32.mrf.mxu0
    %v309 = vadd.f32 0.0, %v308
    %310 = vmatmul.f32.gmra.mxu0 %v134
    %v311 = vpop.f32.mrf.mxu0
    %v312 = vadd.f32 0.0, %v311
    %313 = vmatmul.f32.gmra.mxu0 %v135
    %v314 = vpop.f32.mrf.mxu0
    %v315 = vadd.f32 0.0, %v314
    %316 = vmatmul.f32.gmra.mxu0 %v136
    %v317 = vpop.f32.mrf.mxu0
    %v318 = vadd.f32 0.0, %v317
    %319 = vmatmul.f32.gmra.mxu0 %v137
    %v320 = vpop.f32.mrf.mxu0
    %v321 = vadd.f32 0.0, %v320
    %322 = vmatmul.f32.gmra.mxu0 %v138
    %v323 = vpop.f32.mrf.mxu0
    %v324 = vadd.f32 0.0, %v323
    %325 = vmatmul.f32.gmra.mxu0 %v139
    %v326 = vpop.f32.mrf.mxu0
    %v327 = vadd.f32 0.0, %v326
    %328 = vmatmul.f32.gmra.mxu0 %v140
    %v329 = vpop.f32.mrf.mxu0
    %v330 = vadd.f32 0.0, %v329
    %331 = vmatmul.f32.gmra.mxu0 %v141
    %v332 = vpop.f32.mrf.mxu0
    %v333 = vadd.f32 0.0, %v332
    %334 = vmatmul.f32.gmra.mxu0 %v142
    %v335 = vpop.f32.mrf.mxu0
    %v336 = vadd.f32 0.0, %v335
    %337 = vmatmul.f32.gmra.mxu0 %v143
    %v338 = vpop.f32.mrf.mxu0
    %v339 = vadd.f32 0.0, %v338
    %340 = vmatmul.f32.gmra.mxu0 %v144
    %v341 = vpop.f32.mrf.mxu0
    %v342 = vadd.f32 0.0, %v341
    %343 = vmatmul.f32.gmra.mxu0 %v145
    %v344 = vpop.f32.mrf.mxu0
    %v345 = vadd.f32 0.0, %v344
    %346 = vmatmul.f32.gmra.mxu0 %v146
    %v347 = vpop.f32.mrf.mxu0
    %v348 = vadd.f32 0.0, %v347
    %349 = vmatmul.f32.gmra.mxu0 %v147
    %v350 = vpop.f32.mrf.mxu0
    %v351 = vadd.f32 0.0, %v350
    %352 = vmatmul.f32.gmra.mxu0 %v148
    %v353 = vpop.f32.mrf.mxu0
    %v354 = vadd.f32 0.0, %v353
    %355 = vmatmul.f32.gmra.mxu0 %v149
    %v356 = vpop.f32.mrf.mxu0
    %v357 = vadd.f32 0.0, %v356
    %358 = vmatmul.f32.gmra.mxu0 %v150
    %v359 = vpop.f32.mrf.mxu0
    %v360 = vadd.f32 0.0, %v359
    %361 = vmatmul.f32.gmra.mxu0 %v151
    %v362 = vpop.f32.mrf.mxu0
    %v363 = vadd.f32 0.0, %v362
    %364 = vmatmul.f32.gmra.mxu0 %v152
    %v365 = vpop.f32.mrf.mxu0
    %v366 = vadd.f32 0.0, %v365
    %367 = vmatmul.f32.gmra.mxu0 %v153
    %v368 = vpop.f32.mrf.mxu0
    %v369 = vadd.f32 0.0, %v368
    %370 = vmatmul.f32.gmra.mxu0 %v154
    %v371 = vpop.f32.mrf.mxu0
    %v372 = vadd.f32 0.0, %v371
    %373 = vmatmul.f32.gmra.mxu0 %v155
    %v374 = vpop.f32.mrf.mxu0
    %v375 = vadd.f32 0.0, %v374
    %376 = vmatmul.f32.gmra.mxu0 %v156
    %v377 = vpop.f32.mrf.mxu0
    %v378 = vadd.f32 0.0, %v377
    %379 = vmatmul.f32.gmra.mxu0 %v157
    %v380 = vpop.f32.mrf.mxu0
    %v381 = vadd.f32 0.0, %v380
    %382 = vmatmul.f32.gmra.mxu0 %v158
    %v383 = vpop.f32.mrf.mxu0
    %v384 = vadd.f32 0.0, %v383
    %385 = vmatmul.f32.gmra.mxu0 %v159
    %v386 = vpop.f32.mrf.mxu0
    %v387 = vadd.f32 0.0, %v386
    %388 = vmatmul.f32.gmra.mxu0 %v160
    %v389 = vpop.f32.mrf.mxu0
    %v390 = vadd.f32 0.0, %v389
    %391 = vmatmul.f32.gmra.mxu0 %v161
    %v392 = vpop.f32.mrf.mxu0
    %v393 = vadd.f32 0.0, %v392
    %394 = vmatmul.f32.gmra.mxu0 %v162
    %v395 = vpop.f32.mrf.mxu0
    %v396 = vadd.f32 0.0, %v395
    %397 = vmatmul.f32.gmra.mxu0 %v163
    %v398 = vpop.f32.mrf.mxu0
    %v399 = vadd.f32 0.0, %v398
    %400 = vmatmul.f32.gmra.mxu0 %v164
    %v401 = vpop.f32.mrf.mxu0
    %v402 = vadd.f32 0.0, %v401
    %403 = vmatmul.f32.gmra.mxu0 %v165
    %v404 = vpop.f32.mrf.mxu0
    %v405 = vadd.f32 0.0, %v404
    %406 = vmatmul.f32.gmra.mxu0 %v166
    %v407 = vpop.f32.mrf.mxu0
    %v408 = vadd.f32 0.0, %v407
    %409 = vmatmul.f32.gmra.mxu0 %v167
    %v410 = vpop.f32.mrf.mxu0
    %v411 = vadd.f32 0.0, %v410
    %412 = vmatmul.f32.gmra.mxu0 %v168
    %v413 = vpop.f32.mrf.mxu0
    %v414 = vadd.f32 0.0, %v413
    %415 = vmatmul.f32.gmra.mxu0 %v169
    %v416 = vpop.f32.mrf.mxu0
    %v417 = vadd.f32 0.0, %v416
    %418 = vmatmul.f32.gmra.mxu0 %v170
    %v419 = vpop.f32.mrf.mxu0
    %v420 = vadd.f32 0.0, %v419
    %421 = vmatmul.f32.gmra.mxu0 %v171
    %v422 = vpop.f32.mrf.mxu0
    %v423 = vadd.f32 0.0, %v422
    %424 = vmatmul.f32.gmra.mxu0 %v172
    %v425 = vpop.f32.mrf.mxu0
    %v426 = vadd.f32 0.0, %v425
    %427 = vmatmul.f32.gmra.mxu0 %v173
    %v428 = vpop.f32.mrf.mxu0
    %v429 = vadd.f32 0.0, %v428
    %430 = vmatmul.f32.gmra.mxu0 %v174
    %v431 = vpop.f32.mrf.mxu0
    %v432 = vadd.f32 0.0, %v431
    %433 = vmatmul.f32.gmra.mxu0 %v175
    %v434 = vpop.f32.mrf.mxu0
    %v435 = vadd.f32 0.0, %v434
    %436 = vmatmul.f32.gmra.mxu0 %v176
    %v437 = vpop.f32.mrf.mxu0
    %v438 = vadd.f32 0.0, %v437
    %439 = vmatmul.f32.gmra.mxu0 %v177
    %v440 = vpop.f32.mrf.mxu0
    %v441 = vadd.f32 0.0, %v440
    %442 = vmatmul.f32.gmra.mxu0 %v178
    %v443 = vpop.f32.mrf.mxu0
    %v444 = vadd.f32 0.0, %v443
    %445 = vmatmul.f32.gmra.mxu0 %v179
    %v446 = vpop.f32.mrf.mxu0
    %v447 = vadd.f32 0.0, %v446
    %448 = vmatmul.f32.gmra.mxu0 %v180
    %v449 = vpop.f32.mrf.mxu0
    %v450 = vadd.f32 0.0, %v449
    %451 = vmatmul.f32.gmra.mxu0 %v181
    %v452 = vpop.f32.mrf.mxu0
    %v453 = vadd.f32 0.0, %v452
    %454 = vmatmul.f32.gmra.mxu0 %v182
    %v455 = vpop.f32.mrf.mxu0
    %v456 = vadd.f32 0.0, %v455
    %457 = vmatmul.f32.gmra.mxu0 %v183
    %v458 = vpop.f32.mrf.mxu0
    %v459 = vadd.f32 0.0, %v458
    %460 = vmatmul.f32.gmra.mxu0 %v184
    %v461 = vpop.f32.mrf.mxu0
    %v462 = vadd.f32 0.0, %v461
    %463 = vmatmul.f32.gmra.mxu0 %v185
    %v464 = vpop.f32.mrf.mxu0
    %v465 = vadd.f32 0.0, %v464
    %466 = vmatmul.f32.gmra.mxu0 %v186
    %v467 = vpop.f32.mrf.mxu0
    %v468 = vadd.f32 0.0, %v467
    %469 = vmatmul.f32.gmra.mxu0 %v187
    %v470 = vpop.f32.mrf.mxu0
    %v471 = vadd.f32 0.0, %v470
    %472 = vmatmul.f32.gmra.mxu0 %v188
    %v473 = vpop.f32.mrf.mxu0
    %v474 = vadd.f32 0.0, %v473
    %475 = vmatmul.f32.gmra.mxu0 %v189
    %v476 = vpop.f32.mrf.mxu0
    %v477 = vadd.f32 0.0, %v476
    %478 = vmatmul.f32.gmra.mxu0 %v190
    %v479 = vpop.f32.mrf.mxu0
    %v480 = vadd.f32 0.0, %v479
    %481 = vmatmul.f32.gmra.mxu0 %v191
    %v482 = vpop.f32.mrf.mxu0
    %v483 = vadd.f32 0.0, %v482
    %484 = vmatmul.f32.gmra.mxu0 %v192
    %v485 = vpop.f32.mrf.mxu0
    %v486 = vadd.f32 0.0, %v485
    %487 = vmatmul.f32.gmra.mxu0 %v193
    %v488 = vpop.f32.mrf.mxu0
    %v489 = vadd.f32 0.0, %v488
    %490 = vmatmul.f32.gmra.mxu0 %v194
    %v491 = vpop.f32.mrf.mxu0
    %v492 = vadd.f32 0.0, %v491
    %493 = vmatmul.f32.gmra.mxu0 %v195
    %v494 = vpop.f32.mrf.mxu0
    %v495 = vadd.f32 0.0, %v494
    %496 = vmatmul.f32.gmra.mxu0 %v196
    %v497 = vpop.f32.mrf.mxu0
    %v498 = vadd.f32 0.0, %v497
    %499 = vmatmul.f32.gmra.mxu0 %v197
    %v500 = vpop.f32.mrf.mxu0
    %v501 = vadd.f32 0.0, %v500
    %502 = vmatmul.f32.gmra.mxu0 %v198
    %v503 = vpop.f32.mrf.mxu0
    %v504 = vadd.f32 0.0, %v503
    %505 = vmatmul.f32.gmra.mxu0 %v199
    %v506 = vpop.f32.mrf.mxu0
    %v507 = vadd.f32 0.0, %v506
    %508 = vmatmul.f32.gmra.mxu0 %v200
    %v509 = vpop.f32.mrf.mxu0
    %v510 = vadd.f32 0.0, %v509
    %511 = vmatmul.f32.gmra.mxu0 %v201
    %v512 = vpop.f32.mrf.mxu0
    %v513 = vadd.f32 0.0, %v512
    %514 = vmatmul.f32.gmra.mxu0 %v202
    %v515 = vpop.f32.mrf.mxu0
    %v516 = vadd.f32 0.0, %v515
    %517 = vmatmul.f32.gmra.mxu0 %v203
    %v518 = vpop.f32.mrf.mxu0
    %v519 = vadd.f32 0.0, %v518
    %520 = vmatmul.f32.gmra.mxu0 %v204
    %v521 = vpop.f32.mrf.mxu0
    %v522 = vadd.f32 0.0, %v521
    %523 = vmatmul.f32.gmra.mxu0 %v205
    %v524 = vpop.f32.mrf.mxu0
    %v525 = vadd.f32 0.0, %v524
    %526 = vmatmul.f32.gmra.mxu0 %v206
    %v527 = vpop.f32.mrf.mxu0
    %v528 = vadd.f32 0.0, %v527
    %529 = vmatmul.f32.gmra.mxu0 %v207
    %v530 = vpop.f32.mrf.mxu0
    %v531 = vadd.f32 0.0, %v530
    %532 = vmatmul.f32.gmra.mxu0 %v208
    %v533 = vpop.f32.mrf.mxu0
    %v534 = vadd.f32 0.0, %v533
    %535 = vmatmul.f32.gmra.mxu0 %v209
    %v536 = vpop.f32.mrf.mxu0
    %v537 = vadd.f32 0.0, %v536
    %538 = vmatmul.f32.gmra.mxu0 %v210
    %v539 = vpop.f32.mrf.mxu0
    %v540 = vadd.f32 0.0, %v539
    %541 = vmatmul.f32.gmra.mxu0 %v211
    %v542 = vpop.f32.mrf.mxu0
    %v543 = vadd.f32 0.0, %v542
    %544 = vmatmul.f32.gmra.mxu0 %v212
    %v545 = vpop.f32.mrf.mxu0
    %v546 = vadd.f32 0.0, %v545
    %547 = vmatmul.f32.gmra.mxu0 %v213
    %v548 = vpop.f32.mrf.mxu0
    %v549 = vadd.f32 0.0, %v548
    %550 = vmatmul.f32.gmra.mxu0 %v214
    %v551 = vpop.f32.mrf.mxu0
    %v552 = vadd.f32 0.0, %v551
    %553 = vmatmul.f32.gmra.mxu0 %v215
    %v554 = vpop.f32.mrf.mxu0
    %v555 = vadd.f32 0.0, %v554
    %556 = vmatmul.f32.gmra.mxu0 %v216
    %v557 = vpop.f32.mrf.mxu0
    %v558 = vadd.f32 0.0, %v557
    %559 = vmatmul.f32.gmra.mxu0 %v217
    %v560 = vpop.f32.mrf.mxu0
    %v561 = vadd.f32 0.0, %v560
    %562 = vmatmul.f32.gmra.mxu0 %v218
    %v563 = vpop.f32.mrf.mxu0
    %v564 = vadd.f32 0.0, %v563
    %565 = vmatmul.f32.gmra.mxu0 %v219
    %v566 = vpop.f32.mrf.mxu0
    %v567 = vadd.f32 0.0, %v566
    %568 = vmatmul.f32.gmra.mxu0 %v220
    %v569 = vpop.f32.mrf.mxu0
    %v570 = vadd.f32 0.0, %v569
    %571 = vmatmul.f32.gmra.mxu0 %v221
    %v572 = vpop.f32.mrf.mxu0
    %v573 = vadd.f32 0.0, %v572
    %574 = vmatmul.f32.gmra.mxu0 %v222
    %v575 = vpop.f32.mrf.mxu0
    %v576 = vadd.f32 0.0, %v575
    %577 = vmatmul.f32.gmra.mxu0 %v223
    %v578 = vpop.f32.mrf.mxu0
    %v579 = vadd.f32 0.0, %v578
    %580 = vmatmul.f32.gmra.mxu0 %v224
    %v581 = vpop.f32.mrf.mxu0
    %v582 = vadd.f32 0.0, %v581
    %583 = vmatmul.f32.gmra.mxu0 %v225
    %v584 = vpop.f32.mrf.mxu0
    %v585 = vadd.f32 0.0, %v584
    %586 = vmatmul.f32.gmra.mxu0 %v226
    %v587 = vpop.f32.mrf.mxu0
    %v588 = vadd.f32 0.0, %v587
    %589 = vmatmul.f32.gmra.mxu0 %v227
    %v590 = vpop.f32.mrf.mxu0
    %v591 = vadd.f32 0.0, %v590
    %592 = vmatmul.f32.gmra.mxu0 %v228
    %v593 = vpop.f32.mrf.mxu0
    %v594 = vadd.f32 0.0, %v593
    %595 = vmatmul.f32.gmra.mxu0 %v229
    %v596 = vpop.f32.mrf.mxu0
    %v597 = vadd.f32 0.0, %v596
    %598 = vmatmul.f32.gmra.mxu0 %v230
    %v599 = vpop.f32.mrf.mxu0
    %v600 = vadd.f32 0.0, %v599
    %601 = vmatmul.f32.gmra.mxu0 %v231
    %v602 = vpop.f32.mrf.mxu0
    %v603 = vadd.f32 0.0, %v602
    %604 = vmatmul.f32.gmra.mxu0 %v232
    %v605 = vpop.f32.mrf.mxu0
    %v606 = vadd.f32 0.0, %v605
    %607 = vmatmul.f32.gmra.mxu0 %v233
    %v608 = vpop.f32.mrf.mxu0
    %v609 = vadd.f32 0.0, %v608
    %610 = vmatmul.f32.gmra.mxu0 %v234
    %v611 = vpop.f32.mrf.mxu0
    %v612 = vadd.f32 0.0, %v611
    %613 = vmatmul.f32.gmra.mxu0 %v235
    %v614 = vpop.f32.mrf.mxu0
    %v615 = vadd.f32 0.0, %v614
    %616 = vmatmul.f32.gmra.mxu0 %v236
    %v617 = vpop.f32.mrf.mxu0
    %v618 = vadd.f32 0.0, %v617
    %619 = vmatmul.f32.gmra.mxu0 %v237
    %v620 = vpop.f32.mrf.mxu0
    %v621 = vadd.f32 0.0, %v620
    %622 = vmatmul.f32.gmra.mxu0 %v238
    %v623 = vpop.f32.mrf.mxu0
    %v624 = vadd.f32 0.0, %v623
    %625 = vmatmul.f32.gmra.mxu0 %v239
    %v626 = vpop.f32.mrf.mxu0
    %v627 = vadd.f32 0.0, %v626
    %628 = vmatmul.f32.gmra.mxu0 %v240
    %v629 = vpop.f32.mrf.mxu0
    %v630 = vadd.f32 0.0, %v629
    %631 = vmatmul.f32.gmra.mxu0 %v241
    %v632 = vpop.f32.mrf.mxu0
    %v633 = vadd.f32 0.0, %v632
    %634 = vmatmul.f32.gmra.mxu0 %v242
    %v635 = vpop.f32.mrf.mxu0
    %v636 = vadd.f32 0.0, %v635
    %637 = vmatmul.f32.gmra.mxu0 %v243
    %v638 = vpop.f32.mrf.mxu0
    %v639 = vadd.f32 0.0, %v638
    %640 = vmatmul.f32.gmra.mxu0 %v244
    %v641 = vpop.f32.mrf.mxu0
    %v642 = vadd.f32 0.0, %v641
    %643 = vmatmul.f32.gmra.mxu0 %v245
    %v644 = vpop.f32.mrf.mxu0
    %v645 = vadd.f32 0.0, %v644
    %646 = vmatmul.f32.gmra.mxu0 %v246
    %v647 = vpop.f32.mrf.mxu0
    %v648 = vadd.f32 0.0, %v647
    %649 = vmatmul.f32.gmra.mxu0 %v247
    %v650 = vpop.f32.mrf.mxu0
    %v651 = vadd.f32 0.0, %v650
    %652 = vmatmul.f32.gmra.mxu0 %v248
    %v653 = vpop.f32.mrf.mxu0
    %v654 = vadd.f32 0.0, %v653
    %655 = vmatmul.f32.gmra.mxu0 %v249
    %v656 = vpop.f32.mrf.mxu0
    %v657 = vadd.f32 0.0, %v656
    %658 = vmatmul.f32.gmra.mxu0 %v250
    %v659 = vpop.f32.mrf.mxu0
    %v660 = vadd.f32 0.0, %v659
    %661 = vmatmul.f32.gmra.mxu0 %v251
    %v662 = vpop.f32.mrf.mxu0
    %v663 = vadd.f32 0.0, %v662
    %664 = vmatmul.f32.gmra.mxu0 %v252
    %v665 = vpop.f32.mrf.mxu0
    %v666 = vadd.f32 0.0, %v665
    %667 = vmatmul.f32.gmra.mxu0 %v253
    %v668 = vpop.f32.mrf.mxu0
    %v669 = vadd.f32 0.0, %v668
    %670 = vdwg.mxu0
    %v672 = vrot.slane %v124, 1
    %v673 = vrot.slane %v124, 2
    %v674 = vrot.slane %v124, 3
    %v675 = vrot.slane %v124, 4
    %v676 = vrot.slane %v124, 5
    %v677 = vrot.slane %v124, 6
    %v678 = vrot.slane %v124, 7
    %v679 = vperm.slane %v124, 0
    %v680 = vperm.slane %v672, 0
    %v681 = vperm.slane %v673, 0
    %v682 = vperm.slane %v674, 0
    %v683 = vperm.slane %v675, 0
    %v684 = vperm.slane %v676, 0
    %v685 = vperm.slane %v677, 0
    %v686 = vperm.slane %v678, 0
    %v695 = vadd.f32 %v288, %v679
    %v696 = vadd.f32 %v291, %v679
    %v697 = vadd.f32 %v294, %v679
    %v698 = vadd.f32 %v297, %v679
    %v699 = vadd.f32 %v300, %v679
    %v700 = vadd.f32 %v303, %v679
    %v701 = vadd.f32 %v306, %v679
    %v702 = vadd.f32 %v309, %v679
    %v703 = vadd.f32 %v312, %v679
    %v704 = vadd.f32 %v315, %v679
    %v705 = vadd.f32 %v318, %v679
    %v706 = vadd.f32 %v321, %v679
    %v707 = vadd.f32 %v324, %v679
    %v708 = vadd.f32 %v327, %v679
    %v709 = vadd.f32 %v330, %v679
    %v710 = vadd.f32 %v333, %v679
    %v711 = vadd.f32 %v336, %v680
    %v712 = vadd.f32 %v339, %v680
    %v713 = vadd.f32 %v342, %v680
    %v714 = vadd.f32 %v345, %v680
    %v715 = vadd.f32 %v348, %v680
    %v716 = vadd.f32 %v351, %v680
    %v717 = vadd.f32 %v354, %v680
    %v718 = vadd.f32 %v357, %v680
    %v719 = vadd.f32 %v360, %v680
    %v720 = vadd.f32 %v363, %v680
    %v721 = vadd.f32 %v366, %v680
    %v722 = vadd.f32 %v369, %v680
    %v723 = vadd.f32 %v372, %v680
    %v724 = vadd.f32 %v375, %v680
    %v725 = vadd.f32 %v378, %v680
    %v726 = vadd.f32 %v381, %v680
    %v727 = vadd.f32 %v384, %v681
    %v728 = vadd.f32 %v387, %v681
    %v729 = vadd.f32 %v390, %v681
    %v730 = vadd.f32 %v393, %v681
    %v731 = vadd.f32 %v396, %v681
    %v732 = vadd.f32 %v399, %v681
    %v733 = vadd.f32 %v402, %v681
    %v734 = vadd.f32 %v405, %v681
    %v735 = vadd.f32 %v408, %v681
    %v736 = vadd.f32 %v411, %v681
    %v737 = vadd.f32 %v414, %v681
    %v738 = vadd.f32 %v417, %v681
    %v739 = vadd.f32 %v420, %v681
    %v740 = vadd.f32 %v423, %v681
    %v741 = vadd.f32 %v426, %v681
    %v742 = vadd.f32 %v429, %v681
    %v743 = vadd.f32 %v432, %v682
    %v744 = vadd.f32 %v435, %v682
    %v745 = vadd.f32 %v438, %v682
    %v746 = vadd.f32 %v441, %v682
    %v747 = vadd.f32 %v444, %v682
    %v748 = vadd.f32 %v447, %v682
    %v749 = vadd.f32 %v450, %v682
    %v750 = vadd.f32 %v453, %v682
    %v751 = vadd.f32 %v456, %v682
    %v752 = vadd.f32 %v459, %v682
    %v753 = vadd.f32 %v462, %v682
    %v754 = vadd.f32 %v465, %v682
    %v755 = vadd.f32 %v468, %v682
    %v756 = vadd.f32 %v471, %v682
    %v757 = vadd.f32 %v474, %v682
    %v758 = vadd.f32 %v477, %v682
    %v759 = vadd.f32 %v480, %v683
    %v760 = vadd.f32 %v483, %v683
    %v761 = vadd.f32 %v486, %v683
    %v762 = vadd.f32 %v489, %v683
    %v763 = vadd.f32 %v492, %v683
    %v764 = vadd.f32 %v495, %v683
    %v765 = vadd.f32 %v498, %v683
    %v766 = vadd.f32 %v501, %v683
    %v767 = vadd.f32 %v504, %v683
    %v768 = vadd.f32 %v507, %v683
    %v769 = vadd.f32 %v510, %v683
    %v770 = vadd.f32 %v513, %v683
    %v771 = vadd.f32 %v516, %v683
    %v772 = vadd.f32 %v519, %v683
    %v773 = vadd.f32 %v522, %v683
    %v774 = vadd.f32 %v525, %v683
    %v775 = vadd.f32 %v528, %v684
    %v776 = vadd.f32 %v531, %v684
    %v777 = vadd.f32 %v534, %v684
    %v778 = vadd.f32 %v537, %v684
    %v779 = vadd.f32 %v540, %v684
    %v780 = vadd.f32 %v543, %v684
    %v781 = vadd.f32 %v546, %v684
    %v782 = vadd.f32 %v549, %v684
    %v783 = vadd.f32 %v552, %v684
    %v784 = vadd.f32 %v555, %v684
    %v785 = vadd.f32 %v558, %v684
    %v786 = vadd.f32 %v561, %v684
    %v787 = vadd.f32 %v564, %v684
    %v788 = vadd.f32 %v567, %v684
    %v789 = vadd.f32 %v570, %v684
    %v790 = vadd.f32 %v573, %v684
    %v791 = vadd.f32 %v576, %v685
    %v792 = vadd.f32 %v579, %v685
    %v793 = vadd.f32 %v582, %v685
    %v794 = vadd.f32 %v585, %v685
    %v795 = vadd.f32 %v588, %v685
    %v796 = vadd.f32 %v591, %v685
    %v797 = vadd.f32 %v594, %v685
    %v798 = vadd.f32 %v597, %v685
    %v799 = vadd.f32 %v600, %v685
    %v800 = vadd.f32 %v603, %v685
    %v801 = vadd.f32 %v606, %v685
    %v802 = vadd.f32 %v609, %v685
    %v803 = vadd.f32 %v612, %v685
    %v804 = vadd.f32 %v615, %v685
    %v805 = vadd.f32 %v618, %v685
    %v806 = vadd.f32 %v621, %v685
    %v807 = vadd.f32 %v624, %v686
    %v808 = vadd.f32 %v627, %v686
    %v809 = vadd.f32 %v630, %v686
    %v810 = vadd.f32 %v633, %v686
    %v811 = vadd.f32 %v636, %v686
    %v812 = vadd.f32 %v639, %v686
    %v813 = vadd.f32 %v642, %v686
    %v814 = vadd.f32 %v645, %v686
    %v815 = vadd.f32 %v648, %v686
    %v816 = vadd.f32 %v651, %v686
    %v817 = vadd.f32 %v654, %v686
    %v818 = vadd.f32 %v657, %v686
    %v819 = vadd.f32 %v660, %v686
    %v820 = vadd.f32 %v663, %v686
    %v821 = vadd.f32 %v666, %v686
    %v822 = vadd.f32 %v669, %v686
    %v823 = vtanh.pop %v695
    %v824 = vtanh.pop %v696
    %v825 = vtanh.pop %v697
    %v826 = vtanh.pop %v698
    %v827 = vtanh.pop %v699
    %v828 = vtanh.pop %v700
    %v829 = vtanh.pop %v701
    %v830 = vtanh.pop %v702
    %v831 = vtanh.pop %v703
    %v832 = vtanh.pop %v704
    %v833 = vtanh.pop %v705
    %v834 = vtanh.pop %v706
    %v835 = vtanh.pop %v707
    %v836 = vtanh.pop %v708
    %v837 = vtanh.pop %v709
    %v838 = vtanh.pop %v710
    %v839 = vtanh.pop %v711
    %v840 = vtanh.pop %v712
    %v841 = vtanh.pop %v713
    %v842 = vtanh.pop %v714
    %v843 = vtanh.pop %v715
    %v844 = vtanh.pop %v716
    %v845 = vtanh.pop %v717
    %v846 = vtanh.pop %v718
    %v847 = vtanh.pop %v719
    %v848 = vtanh.pop %v720
    %v849 = vtanh.pop %v721
    %v850 = vtanh.pop %v722
    %v851 = vtanh.pop %v723
    %v852 = vtanh.pop %v724
    %v853 = vtanh.pop %v725
    %v854 = vtanh.pop %v726
    %v855 = vtanh.pop %v727
    %v856 = vtanh.pop %v728
    %v857 = vtanh.pop %v729
    %v858 = vtanh.pop %v730
    %v859 = vtanh.pop %v731
    %v860 = vtanh.pop %v732
    %v861 = vtanh.pop %v733
    %v862 = vtanh.pop %v734
    %v863 = vtanh.pop %v735
    %v864 = vtanh.pop %v736
    %v865 = vtanh.pop %v737
    %v866 = vtanh.pop %v738
    %v867 = vtanh.pop %v739
    %v868 = vtanh.pop %v740
    %v869 = vtanh.pop %v741
    %v870 = vtanh.pop %v742
    %v871 = vtanh.pop %v743
    %v872 = vtanh.pop %v744
    %v873 = vtanh.pop %v745
    %v874 = vtanh.pop %v746
    %v875 = vtanh.pop %v747
    %v876 = vtanh.pop %v748
    %v877 = vtanh.pop %v749
    %v878 = vtanh.pop %v750
    %v879 = vtanh.pop %v751
    %v880 = vtanh.pop %v752
    %v881 = vtanh.pop %v753
    %v882 = vtanh.pop %v754
    %v883 = vtanh.pop %v755
    %v884 = vtanh.pop %v756
    %v885 = vtanh.pop %v757
    %v886 = vtanh.pop %v758
    %v887 = vtanh.pop %v759
    %v888 = vtanh.pop %v760
    %v889 = vtanh.pop %v761
    %v890 = vtanh.pop %v762
    %v891 = vtanh.pop %v763
    %v892 = vtanh.pop %v764
    %v893 = vtanh.pop %v765
    %v894 = vtanh.pop %v766
    %v895 = vtanh.pop %v767
    %v896 = vtanh.pop %v768
    %v897 = vtanh.pop %v769
    %v898 = vtanh.pop %v770
    %v899 = vtanh.pop %v771
    %v900 = vtanh.pop %v772
    %v901 = vtanh.pop %v773
    %v902 = vtanh.pop %v774
    %v903 = vtanh.pop %v775
    %v904 = vtanh.pop %v776
    %v905 = vtanh.pop %v777
    %v906 = vtanh.pop %v778
    %v907 = vtanh.pop %v779
    %v908 = vtanh.pop %v780
    %v909 = vtanh.pop %v781
    %v910 = vtanh.pop %v782
    %v911 = vtanh.pop %v783
    %v912 = vtanh.pop %v784
    %v913 = vtanh.pop %v785
    %v914 = vtanh.pop %v786
    %v915 = vtanh.pop %v787
    %v916 = vtanh.pop %v788
    %v917 = vtanh.pop %v789
    %v918 = vtanh.pop %v790
    %v919 = vtanh.pop %v791
    %v920 = vtanh.pop %v792
    %v921 = vtanh.pop %v793
    %v922 = vtanh.pop %v794
    %v923 = vtanh.pop %v795
    %v924 = vtanh.pop %v796
    %v925 = vtanh.pop %v797
    %v926 = vtanh.pop %v798
    %v927 = vtanh.pop %v799
    %v928 = vtanh.pop %v800
    %v929 = vtanh.pop %v801
    %v930 = vtanh.pop %v802
    %v931 = vtanh.pop %v803
    %v932 = vtanh.pop %v804
    %v933 = vtanh.pop %v805
    %v934 = vtanh.pop %v806
    %v935 = vtanh.pop %v807
    %v936 = vtanh.pop %v808
    %v937 = vtanh.pop %v809
    %v938 = vtanh.pop %v810
    %v939 = vtanh.pop %v811
    %v940 = vtanh.pop %v812
    %v941 = vtanh.pop %v813
    %v942 = vtanh.pop %v814
    %v943 = vtanh.pop %v815
    %v944 = vtanh.pop %v816
    %v945 = vtanh.pop %v817
    %v946 = vtanh.pop %v818
    %v947 = vtanh.pop %v819
    %v948 = vtanh.pop %v820
    %v949 = vtanh.pop %v821
    %v950 = vtanh.pop %v822
    %v951 = vld [vmem:[%s5] sm:$0x1]
    %v953 = vperm.slane %v951, 0
    %v955 = vmul.f32 %v823, %v953
    %v956 = vmul.f32 %v824, %v953
    %v957 = vmul.f32 %v825, %v953
    %v958 = vmul.f32 %v826, %v953
    %v959 = vmul.f32 %v827, %v953
    %v960 = vmul.f32 %v828, %v953
    %v961 = vmul.f32 %v829, %v953
    %v962 = vmul.f32 %v830, %v953
    %v963 = vmul.f32 %v831, %v953
    %v964 = vmul.f32 %v832, %v953
    %v965 = vmul.f32 %v833, %v953
    %v966 = vmul.f32 %v834, %v953
    %v967 = vmul.f32 %v835, %v953
    %v968 = vmul.f32 %v836, %v953
    %v969 = vmul.f32 %v837, %v953
    %v970 = vmul.f32 %v838, %v953
    %v971 = vmul.f32 %v839, %v953
    %v972 = vmul.f32 %v840, %v953
    %v973 = vmul.f32 %v841, %v953
    %v974 = vmul.f32 %v842, %v953
    %v975 = vmul.f32 %v843, %v953
    %v976 = vmul.f32 %v844, %v953
    %v977 = vmul.f32 %v845, %v953
    %v978 = vmul.f32 %v846, %v953
    %v979 = vmul.f32 %v847, %v953
    %v980 = vmul.f32 %v848, %v953
    %v981 = vmul.f32 %v849, %v953
    %v982 = vmul.f32 %v850, %v953
    %v983 = vmul.f32 %v851, %v953
    %v984 = vmul.f32 %v852, %v953
    %v985 = vmul.f32 %v853, %v953
    %v986 = vmul.f32 %v854, %v953
    %v987 = vmul.f32 %v855, %v953
    %v988 = vmul.f32 %v856, %v953
    %v989 = vmul.f32 %v857, %v953
    %v990 = vmul.f32 %v858, %v953
    %v991 = vmul.f32 %v859, %v953
    %v992 = vmul.f32 %v860, %v953
    %v993 = vmul.f32 %v861, %v953
    %v994 = vmul.f32 %v862, %v953
    %v995 = vmul.f32 %v863, %v953
    %v996 = vmul.f32 %v864, %v953
    %v997 = vmul.f32 %v865, %v953
    %v998 = vmul.f32 %v866, %v953
    %v999 = vmul.f32 %v867, %v953
    %v1000 = vmul.f32 %v868, %v953
    %v1001 = vmul.f32 %v869, %v953
    %v1002 = vmul.f32 %v870, %v953
    %v1003 = vmul.f32 %v871, %v953
    %v1004 = vmul.f32 %v872, %v953
    %v1005 = vmul.f32 %v873, %v953
    %v1006 = vmul.f32 %v874, %v953
    %v1007 = vmul.f32 %v875, %v953
    %v1008 = vmul.f32 %v876, %v953
    %v1009 = vmul.f32 %v877, %v953
    %v1010 = vmul.f32 %v878, %v953
    %v1011 = vmul.f32 %v879, %v953
    %v1012 = vmul.f32 %v880, %v953
    %v1013 = vmul.f32 %v881, %v953
    %v1014 = vmul.f32 %v882, %v953
    %v1015 = vmul.f32 %v883, %v953
    %v1016 = vmul.f32 %v884, %v953
    %v1017 = vmul.f32 %v885, %v953
    %v1018 = vmul.f32 %v886, %v953
    %v1019 = vmul.f32 %v887, %v953
    %v1020 = vmul.f32 %v888, %v953
    %v1021 = vmul.f32 %v889, %v953
    %v1022 = vmul.f32 %v890, %v953
    %v1023 = vmul.f32 %v891, %v953
    %v1024 = vmul.f32 %v892, %v953
    %v1025 = vmul.f32 %v893, %v953
    %v1026 = vmul.f32 %v894, %v953
    %v1027 = vmul.f32 %v895, %v953
    %v1028 = vmul.f32 %v896, %v953
    %v1029 = vmul.f32 %v897, %v953
    %v1030 = vmul.f32 %v898, %v953
    %v1031 = vmul.f32 %v899, %v953
    %v1032 = vmul.f32 %v900, %v953
    %v1033 = vmul.f32 %v901, %v953
    %v1034 = vmul.f32 %v902, %v953
    %v1035 = vmul.f32 %v903, %v953
    %v1036 = vmul.f32 %v904, %v953
    %v1037 = vmul.f32 %v905, %v953
    %v1038 = vmul.f32 %v906, %v953
    %v1039 = vmul.f32 %v907, %v953
    %v1040 = vmul.f32 %v908, %v953
    %v1041 = vmul.f32 %v909, %v953
    %v1042 = vmul.f32 %v910, %v953
    %v1043 = vmul.f32 %v911, %v953
    %v1044 = vmul.f32 %v912, %v953
    %v1045 = vmul.f32 %v913, %v953
    %v1046 = vmul.f32 %v914, %v953
    %v1047 = vmul.f32 %v915, %v953
    %v1048 = vmul.f32 %v916, %v953
    %v1049 = vmul.f32 %v917, %v953
    %v1050 = vmul.f32 %v918, %v953
    %v1051 = vmul.f32 %v919, %v953
    %v1052 = vmul.f32 %v920, %v953
    %v1053 = vmul.f32 %v921, %v953
    %v1054 = vmul.f32 %v922, %v953
    %v1055 = vmul.f32 %v923, %v953
    %v1056 = vmul.f32 %v924, %v953
    %v1057 = vmul.f32 %v925, %v953
    %v1058 = vmul.f32 %v926, %v953
    %v1059 = vmul.f32 %v927, %v953
    %v1060 = vmul.f32 %v928, %v953
    %v1061 = vmul.f32 %v929, %v953
    %v1062 = vmul.f32 %v930, %v953
    %v1063 = vmul.f32 %v931, %v953
    %v1064 = vmul.f32 %v932, %v953
    %v1065 = vmul.f32 %v933, %v953
    %v1066 = vmul.f32 %v934, %v953
    %v1067 = vmul.f32 %v935, %v953
    %v1068 = vmul.f32 %v936, %v953
    %v1069 = vmul.f32 %v937, %v953
    %v1070 = vmul.f32 %v938, %v953
    %v1071 = vmul.f32 %v939, %v953
    %v1072 = vmul.f32 %v940, %v953
    %v1073 = vmul.f32 %v941, %v953
    %v1074 = vmul.f32 %v942, %v953
    %v1075 = vmul.f32 %v943, %v953
    %v1076 = vmul.f32 %v944, %v953
    %v1077 = vmul.f32 %v945, %v953
    %v1078 = vmul.f32 %v946, %v953
    %v1079 = vmul.f32 %v947, %v953
    %v1080 = vmul.f32 %v948, %v953
    %v1081 = vmul.f32 %v949, %v953
    %v1082 = vmul.f32 %v950, %v953
    %1083 = vadd.xlane.f32.xlu0 %v955
    %v1084 = vpop.xlane.xlu0 %1083
    %1085 = vadd.xlane.f32.xlu0 %v956
    %v1086 = vpop.xlane.xlu0 %1085
    %1087 = vadd.xlane.f32.xlu0 %v957
    %v1088 = vpop.xlane.xlu0 %1087
    %1089 = vadd.xlane.f32.xlu0 %v958
    %v1090 = vpop.xlane.xlu0 %1089
    %1091 = vadd.xlane.f32.xlu0 %v959
    %v1092 = vpop.xlane.xlu0 %1091
    %1093 = vadd.xlane.f32.xlu0 %v960
    %v1094 = vpop.xlane.xlu0 %1093
    %1095 = vadd.xlane.f32.xlu0 %v961
    %v1096 = vpop.xlane.xlu0 %1095
    %1097 = vadd.xlane.f32.xlu0 %v962
    %v1098 = vpop.xlane.xlu0 %1097
    %1099 = vadd.xlane.f32.xlu0 %v963
    %v1100 = vpop.xlane.xlu0 %1099
    %1101 = vadd.xlane.f32.xlu0 %v964
    %v1102 = vpop.xlane.xlu0 %1101
    %1103 = vadd.xlane.f32.xlu0 %v965
    %v1104 = vpop.xlane.xlu0 %1103
    %1105 = vadd.xlane.f32.xlu0 %v966
    %v1106 = vpop.xlane.xlu0 %1105
    %1107 = vadd.xlane.f32.xlu0 %v967
    %v1108 = vpop.xlane.xlu0 %1107
    %1109 = vadd.xlane.f32.xlu0 %v968
    %v1110 = vpop.xlane.xlu0 %1109
    %1111 = vadd.xlane.f32.xlu0 %v969
    %v1112 = vpop.xlane.xlu0 %1111
    %1113 = vadd.xlane.f32.xlu0 %v970
    %v1114 = vpop.xlane.xlu0 %1113
    %1115 = vadd.xlane.f32.xlu0 %v971
    %v1116 = vpop.xlane.xlu0 %1115
    %1117 = vadd.xlane.f32.xlu0 %v972
    %v1118 = vpop.xlane.xlu0 %1117
    %1119 = vadd.xlane.f32.xlu0 %v973
    %v1120 = vpop.xlane.xlu0 %1119
    %1121 = vadd.xlane.f32.xlu0 %v974
    %v1122 = vpop.xlane.xlu0 %1121
    %1123 = vadd.xlane.f32.xlu0 %v975
    %v1124 = vpop.xlane.xlu0 %1123
    %1125 = vadd.xlane.f32.xlu0 %v976
    %v1126 = vpop.xlane.xlu0 %1125
    %1127 = vadd.xlane.f32.xlu0 %v977
    %v1128 = vpop.xlane.xlu0 %1127
    %1129 = vadd.xlane.f32.xlu0 %v978
    %v1130 = vpop.xlane.xlu0 %1129
    %1131 = vadd.xlane.f32.xlu0 %v979
    %v1132 = vpop.xlane.xlu0 %1131
    %1133 = vadd.xlane.f32.xlu0 %v980
    %v1134 = vpop.xlane.xlu0 %1133
    %1135 = vadd.xlane.f32.xlu0 %v981
    %v1136 = vpop.xlane.xlu0 %1135
    %1137 = vadd.xlane.f32.xlu0 %v982
    %v1138 = vpop.xlane.xlu0 %1137
    %1139 = vadd.xlane.f32.xlu0 %v983
    %v1140 = vpop.xlane.xlu0 %1139
    %1141 = vadd.xlane.f32.xlu0 %v984
    %v1142 = vpop.xlane.xlu0 %1141
    %1143 = vadd.xlane.f32.xlu0 %v985
    %v1144 = vpop.xlane.xlu0 %1143
    %1145 = vadd.xlane.f32.xlu0 %v986
    %v1146 = vpop.xlane.xlu0 %1145
    %1147 = vadd.xlane.f32.xlu0 %v987
    %v1148 = vpop.xlane.xlu0 %1147
    %1149 = vadd.xlane.f32.xlu0 %v988
    %v1150 = vpop.xlane.xlu0 %1149
    %1151 = vadd.xlane.f32.xlu0 %v989
    %v1152 = vpop.xlane.xlu0 %1151
    %1153 = vadd.xlane.f32.xlu0 %v990
    %v1154 = vpop.xlane.xlu0 %1153
    %1155 = vadd.xlane.f32.xlu0 %v991
    %v1156 = vpop.xlane.xlu0 %1155
    %1157 = vadd.xlane.f32.xlu0 %v992
    %v1158 = vpop.xlane.xlu0 %1157
    %1159 = vadd.xlane.f32.xlu0 %v993
    %v1160 = vpop.xlane.xlu0 %1159
    %1161 = vadd.xlane.f32.xlu0 %v994
    %v1162 = vpop.xlane.xlu0 %1161
    %1163 = vadd.xlane.f32.xlu0 %v995
    %v1164 = vpop.xlane.xlu0 %1163
    %1165 = vadd.xlane.f32.xlu0 %v996
    %v1166 = vpop.xlane.xlu0 %1165
    %1167 = vadd.xlane.f32.xlu0 %v997
    %v1168 = vpop.xlane.xlu0 %1167
    %1169 = vadd.xlane.f32.xlu0 %v998
    %v1170 = vpop.xlane.xlu0 %1169
    %1171 = vadd.xlane.f32.xlu0 %v999
    %v1172 = vpop.xlane.xlu0 %1171
    %1173 = vadd.xlane.f32.xlu0 %v1000
    %v1174 = vpop.xlane.xlu0 %1173
    %1175 = vadd.xlane.f32.xlu0 %v1001
    %v1176 = vpop.xlane.xlu0 %1175
    %1177 = vadd.xlane.f32.xlu0 %v1002
    %v1178 = vpop.xlane.xlu0 %1177
    %1179 = vadd.xlane.f32.xlu0 %v1003
    %v1180 = vpop.xlane.xlu0 %1179
    %1181 = vadd.xlane.f32.xlu0 %v1004
    %v1182 = vpop.xlane.xlu0 %1181
    %1183 = vadd.xlane.f32.xlu0 %v1005
    %v1184 = vpop.xlane.xlu0 %1183
    %1185 = vadd.xlane.f32.xlu0 %v1006
    %v1186 = vpop.xlane.xlu0 %1185
    %1187 = vadd.xlane.f32.xlu0 %v1007
    %v1188 = vpop.xlane.xlu0 %1187
    %1189 = vadd.xlane.f32.xlu0 %v1008
    %v1190 = vpop.xlane.xlu0 %1189
    %1191 = vadd.xlane.f32.xlu0 %v1009
    %v1192 = vpop.xlane.xlu0 %1191
    %1193 = vadd.xlane.f32.xlu0 %v1010
    %v1194 = vpop.xlane.xlu0 %1193
    %1195 = vadd.xlane.f32.xlu0 %v1011
    %v1196 = vpop.xlane.xlu0 %1195
    %1197 = vadd.xlane.f32.xlu0 %v1012
    %v1198 = vpop.xlane.xlu0 %1197
    %1199 = vadd.xlane.f32.xlu0 %v1013
    %v1200 = vpop.xlane.xlu0 %1199
    %1201 = vadd.xlane.f32.xlu0 %v1014
    %v1202 = vpop.xlane.xlu0 %1201
    %1203 = vadd.xlane.f32.xlu0 %v1015
    %v1204 = vpop.xlane.xlu0 %1203
    %1205 = vadd.xlane.f32.xlu0 %v1016
    %v1206 = vpop.xlane.xlu0 %1205
    %1207 = vadd.xlane.f32.xlu0 %v1017
    %v1208 = vpop.xlane.xlu0 %1207
    %1209 = vadd.xlane.f32.xlu0 %v1018
    %v1210 = vpop.xlane.xlu0 %1209
    %1211 = vadd.xlane.f32.xlu0 %v1019
    %v1212 = vpop.xlane.xlu0 %1211
    %1213 = vadd.xlane.f32.xlu0 %v1020
    %v1214 = vpop.xlane.xlu0 %1213
    %1215 = vadd.xlane.f32.xlu0 %v1021
    %v1216 = vpop.xlane.xlu0 %1215
    %1217 = vadd.xlane.f32.xlu0 %v1022
    %v1218 = vpop.xlane.xlu0 %1217
    %1219 = vadd.xlane.f32.xlu0 %v1023
    %v1220 = vpop.xlane.xlu0 %1219
    %1221 = vadd.xlane.f32.xlu0 %v1024
    %v1222 = vpop.xlane.xlu0 %1221
    %1223 = vadd.xlane.f32.xlu0 %v1025
    %v1224 = vpop.xlane.xlu0 %1223
    %1225 = vadd.xlane.f32.xlu0 %v1026
    %v1226 = vpop.xlane.xlu0 %1225
    %1227 = vadd.xlane.f32.xlu0 %v1027
    %v1228 = vpop.xlane.xlu0 %1227
    %1229 = vadd.xlane.f32.xlu0 %v1028
    %v1230 = vpop.xlane.xlu0 %1229
    %1231 = vadd.xlane.f32.xlu0 %v1029
    %v1232 = vpop.xlane.xlu0 %1231
    %1233 = vadd.xlane.f32.xlu0 %v1030
    %v1234 = vpop.xlane.xlu0 %1233
    %1235 = vadd.xlane.f32.xlu0 %v1031
    %v1236 = vpop.xlane.xlu0 %1235
    %1237 = vadd.xlane.f32.xlu0 %v1032
    %v1238 = vpop.xlane.xlu0 %1237
    %1239 = vadd.xlane.f32.xlu0 %v1033
    %v1240 = vpop.xlane.xlu0 %1239
    %1241 = vadd.xlane.f32.xlu0 %v1034
    %v1242 = vpop.xlane.xlu0 %1241
    %1243 = vadd.xlane.f32.xlu0 %v1035
    %v1244 = vpop.xlane.xlu0 %1243
    %1245 = vadd.xlane.f32.xlu0 %v1036
    %v1246 = vpop.xlane.xlu0 %1245
    %1247 = vadd.xlane.f32.xlu0 %v1037
    %v1248 = vpop.xlane.xlu0 %1247
    %1249 = vadd.xlane.f32.xlu0 %v1038
    %v1250 = vpop.xlane.xlu0 %1249
    %1251 = vadd.xlane.f32.xlu0 %v1039
    %v1252 = vpop.xlane.xlu0 %1251
    %1253 = vadd.xlane.f32.xlu0 %v1040
    %v1254 = vpop.xlane.xlu0 %1253
    %1255 = vadd.xlane.f32.xlu0 %v1041
    %v1256 = vpop.xlane.xlu0 %1255
    %1257 = vadd.xlane.f32.xlu0 %v1042
    %v1258 = vpop.xlane.xlu0 %1257
    %1259 = vadd.xlane.f32.xlu0 %v1043
    %v1260 = vpop.xlane.xlu0 %1259
    %1261 = vadd.xlane.f32.xlu0 %v1044
    %v1262 = vpop.xlane.xlu0 %1261
    %1263 = vadd.xlane.f32.xlu0 %v1045
    %v1264 = vpop.xlane.xlu0 %1263
    %1265 = vadd.xlane.f32.xlu0 %v1046
    %v1266 = vpop.xlane.xlu0 %1265
    %1267 = vadd.xlane.f32.xlu0 %v1047
    %v1268 = vpop.xlane.xlu0 %1267
    %1269 = vadd.xlane.f32.xlu0 %v1048
    %v1270 = vpop.xlane.xlu0 %1269
    %1271 = vadd.xlane.f32.xlu0 %v1049
    %v1272 = vpop.xlane.xlu0 %1271
    %1273 = vadd.xlane.f32.xlu0 %v1050
    %v1274 = vpop.xlane.xlu0 %1273
    %1275 = vadd.xlane.f32.xlu0 %v1051
    %v1276 = vpop.xlane.xlu0 %1275
    %1277 = vadd.xlane.f32.xlu0 %v1052
    %v1278 = vpop.xlane.xlu0 %1277
    %1279 = vadd.xlane.f32.xlu0 %v1053
    %v1280 = vpop.xlane.xlu0 %1279
    %1281 = vadd.xlane.f32.xlu0 %v1054
    %v1282 = vpop.xlane.xlu0 %1281
    %1283 = vadd.xlane.f32.xlu0 %v1055
    %v1284 = vpop.xlane.xlu0 %1283
    %1285 = vadd.xlane.f32.xlu0 %v1056
    %v1286 = vpop.xlane.xlu0 %1285
    %1287 = vadd.xlane.f32.xlu0 %v1057
    %v1288 = vpop.xlane.xlu0 %1287
    %1289 = vadd.xlane.f32.xlu0 %v1058
    %v1290 = vpop.xlane.xlu0 %1289
    %1291 = vadd.xlane.f32.xlu0 %v1059
    %v1292 = vpop.xlane.xlu0 %1291
    %1293 = vadd.xlane.f32.xlu0 %v1060
    %v1294 = vpop.xlane.xlu0 %1293
    %1295 = vadd.xlane.f32.xlu0 %v1061
    %v1296 = vpop.xlane.xlu0 %1295
    %1297 = vadd.xlane.f32.xlu0 %v1062
    %v1298 = vpop.xlane.xlu0 %1297
    %1299 = vadd.xlane.f32.xlu0 %v1063
    %v1300 = vpop.xlane.xlu0 %1299
    %1301 = vadd.xlane.f32.xlu0 %v1064
    %v1302 = vpop.xlane.xlu0 %1301
    %1303 = vadd.xlane.f32.xlu0 %v1065
    %v1304 = vpop.xlane.xlu0 %1303
    %1305 = vadd.xlane.f32.xlu0 %v1066
    %v1306 = vpop.xlane.xlu0 %1305
    %1307 = vadd.xlane.f32.xlu0 %v1067
    %v1308 = vpop.xlane.xlu0 %1307
    %1309 = vadd.xlane.f32.xlu0 %v1068
    %v1310 = vpop.xlane.xlu0 %1309
    %1311 = vadd.xlane.f32.xlu0 %v1069
    %v1312 = vpop.xlane.xlu0 %1311
    %1313 = vadd.xlane.f32.xlu0 %v1070
    %v1314 = vpop.xlane.xlu0 %1313
    %1315 = vadd.xlane.f32.xlu0 %v1071
    %v1316 = vpop.xlane.xlu0 %1315
    %1317 = vadd.xlane.f32.xlu0 %v1072
    %v1318 = vpop.xlane.xlu0 %1317
    %1319 = vadd.xlane.f32.xlu0 %v1073
    %v1320 = vpop.xlane.xlu0 %1319
    %1321 = vadd.xlane.f32.xlu0 %v1074
    %v1322 = vpop.xlane.xlu0 %1321
    %1323 = vadd.xlane.f32.xlu0 %v1075
    %v1324 = vpop.xlane.xlu0 %1323
    %1325 = vadd.xlane.f32.xlu0 %v1076
    %v1326 = vpop.xlane.xlu0 %1325
    %1327 = vadd.xlane.f32.xlu0 %v1077
    %v1328 = vpop.xlane.xlu0 %1327
    %1329 = vadd.xlane.f32.xlu0 %v1078
    %v1330 = vpop.xlane.xlu0 %1329
    %1331 = vadd.xlane.f32.xlu0 %v1079
    %v1332 = vpop.xlane.xlu0 %1331
    %1333 = vadd.xlane.f32.xlu0 %v1080
    %v1334 = vpop.xlane.xlu0 %1333
    %1335 = vadd.xlane.f32.xlu0 %v1081
    %v1336 = vpop.xlane.xlu0 %1335
    %1337 = vadd.xlane.f32.xlu0 %v1082
    %v1338 = vpop.xlane.xlu0 %1337
    %v1339 = vlaneseq
    %v1340 = vand.u32 %v1339, 127
    %vm1341 = vcmp.lt.s32.totalorder %v1340, 8
    %v1470 = vperm.slane %v1084, %v1340
    %v1471 = vadd.s32 %v1340, 4294967288
    %v1472 = vperm.slane %v1086, %v1471
    %vm1473 = vcmask 130112
    %v1474 = vsel %vm1473, %v1472, %v1470
    %v1475 = vadd.s32 %v1340, 4294967280
    %v1476 = vperm.slane %v1088, %v1475
    %vm1477 = vcmask 195712
    %v1478 = vsel %vm1477, %v1476, %v1474
    %v1479 = vadd.s32 %v1340, 4294967272
    %v1480 = vperm.slane %v1090, %v1479
    %vm1481 = vcmask 261312
    %v1482 = vsel %vm1481, %v1480, %v1478
    %v1483 = vadd.s32 %v1340, 4294967264
    %v1484 = vperm.slane %v1092, %v1483
    %vm1485 = vcmask 326912
    %v1486 = vsel %vm1485, %v1484, %v1482
    %v1487 = vadd.s32 %v1340, 4294967256
    %v1488 = vperm.slane %v1094, %v1487
    %vm1489 = vcmask 392512
    %v1490 = vsel %vm1489, %v1488, %v1486
    %v1491 = vadd.s32 %v1340, 4294967248
    %v1492 = vperm.slane %v1096, %v1491
    %vm1493 = vcmask 458112
    %v1494 = vsel %vm1493, %v1492, %v1490
    %v1495 = vadd.s32 %v1340, 4294967240
    %v1496 = vperm.slane %v1098, %v1495
    %vm1497 = vcmask 523712
    %v1498 = vsel %vm1497, %v1496, %v1494
    %v1499 = vadd.s32 %v1340, 4294967232
    %v1500 = vperm.slane %v1100, %v1499
    %vm1501 = vcmask 589312
    %v1502 = vsel %vm1501, %v1500, %v1498
    %v1503 = vadd.s32 %v1340, 4294967224
    %v1504 = vperm.slane %v1102, %v1503
    %vm1505 = vcmask 654912
    %v1506 = vsel %vm1505, %v1504, %v1502
    %v1507 = vadd.s32 %v1340, 4294967216
    %v1508 = vperm.slane %v1104, %v1507
    %vm1509 = vcmask 720512
    %v1510 = vsel %vm1509, %v1508, %v1506
    %v1511 = vadd.s32 %v1340, 4294967208
    %v1512 = vperm.slane %v1106, %v1511
    %vm1513 = vcmask 786112
    %v1514 = vsel %vm1513, %v1512, %v1510
    %v1515 = vadd.s32 %v1340, 4294967200
    %v1516 = vperm.slane %v1108, %v1515
    %vm1517 = vcmask 851712
    %v1518 = vsel %vm1517, %v1516, %v1514
    %v1519 = vadd.s32 %v1340, 4294967192
    %v1520 = vperm.slane %v1110, %v1519
    %vm1521 = vcmask 917312
    %v1522 = vsel %vm1521, %v1520, %v1518
    %v1523 = vadd.s32 %v1340, 4294967184
    %v1524 = vperm.slane %v1112, %v1523
    %vm1525 = vcmask 982912
    %v1526 = vsel %vm1525, %v1524, %v1522
    %v1527 = vadd.s32 %v1340, 4294967176
    %v1528 = vperm.slane %v1114, %v1527
    %vm1529 = vcmask 1048512
    %v1530 = vsel %vm1529, %v1528, %v1526
    %v1531 = vperm.slane %v1116, %v1340
    %v1532 = vperm.slane %v1118, %v1471
    %v1533 = vsel %vm1473, %v1532, %v1531
    %v1534 = vperm.slane %v1120, %v1475
    %v1535 = vsel %vm1477, %v1534, %v1533
    %v1536 = vperm.slane %v1122, %v1479
    %v1537 = vsel %vm1481, %v1536, %v1535
    %v1538 = vperm.slane %v1124, %v1483
    %v1539 = vsel %vm1485, %v1538, %v1537
    %v1540 = vperm.slane %v1126, %v1487
    %v1541 = vsel %vm1489, %v1540, %v1539
    %v1542 = vperm.slane %v1128, %v1491
    %v1543 = vsel %vm1493, %v1542, %v1541
    %v1544 = vperm.slane %v1130, %v1495
    %v1545 = vsel %vm1497, %v1544, %v1543
    %v1546 = vperm.slane %v1132, %v1499
    %v1547 = vsel %vm1501, %v1546, %v1545
    %v1548 = vperm.slane %v1134, %v1503
    %v1549 = vsel %vm1505, %v1548, %v1547
    %v1550 = vperm.slane %v1136, %v1507
    %v1551 = vsel %vm1509, %v1550, %v1549
    %v1552 = vperm.slane %v1138, %v1511
    %v1553 = vsel %vm1513, %v1552, %v1551
    %v1554 = vperm.slane %v1140, %v1515
    %v1555 = vsel %vm1517, %v1554, %v1553
    %v1556 = vperm.slane %v1142, %v1519
    %v1557 = vsel %vm1521, %v1556, %v1555
    %v1558 = vperm.slane %v1144, %v1523
    %v1559 = vsel %vm1525, %v1558, %v1557
    %v1560 = vperm.slane %v1146, %v1527
    %v1561 = vsel %vm1529, %v1560, %v1559
    %v1562 = vperm.slane %v1148, %v1340
    %v1563 = vperm.slane %v1150, %v1471
    %v1564 = vsel %vm1473, %v1563, %v1562
    %v1565 = vperm.slane %v1152, %v1475
    %v1566 = vsel %vm1477, %v1565, %v1564
    %v1567 = vperm.slane %v1154, %v1479
    %v1568 = vsel %vm1481, %v1567, %v1566
    %v1569 = vperm.slane %v1156, %v1483
    %v1570 = vsel %vm1485, %v1569, %v1568
    %v1571 = vperm.slane %v1158, %v1487
    %v1572 = vsel %vm1489, %v1571, %v1570
    %v1573 = vperm.slane %v1160, %v1491
    %v1574 = vsel %vm1493, %v1573, %v1572
    %v1575 = vperm.slane %v1162, %v1495
    %v1576 = vsel %vm1497, %v1575, %v1574
    %v1577 = vperm.slane %v1164, %v1499
    %v1578 = vsel %vm1501, %v1577, %v1576
    %v1579 = vperm.slane %v1166, %v1503
    %v1580 = vsel %vm1505, %v1579, %v1578
    %v1581 = vperm.slane %v1168, %v1507
    %v1582 = vsel %vm1509, %v1581, %v1580
    %v1583 = vperm.slane %v1170, %v1511
    %v1584 = vsel %vm1513, %v1583, %v1582
    %v1585 = vperm.slane %v1172, %v1515
    %v1586 = vsel %vm1517, %v1585, %v1584
    %v1587 = vperm.slane %v1174, %v1519
    %v1588 = vsel %vm1521, %v1587, %v1586
    %v1589 = vperm.slane %v1176, %v1523
    %v1590 = vsel %vm1525, %v1589, %v1588
    %v1591 = vperm.slane %v1178, %v1527
    %v1592 = vsel %vm1529, %v1591, %v1590
    %v1593 = vperm.slane %v1180, %v1340
    %v1594 = vperm.slane %v1182, %v1471
    %v1595 = vsel %vm1473, %v1594, %v1593
    %v1596 = vperm.slane %v1184, %v1475
    %v1597 = vsel %vm1477, %v1596, %v1595
    %v1598 = vperm.slane %v1186, %v1479
    %v1599 = vsel %vm1481, %v1598, %v1597
    %v1600 = vperm.slane %v1188, %v1483
    %v1601 = vsel %vm1485, %v1600, %v1599
    %v1602 = vperm.slane %v1190, %v1487
    %v1603 = vsel %vm1489, %v1602, %v1601
    %v1604 = vperm.slane %v1192, %v1491
    %v1605 = vsel %vm1493, %v1604, %v1603
    %v1606 = vperm.slane %v1194, %v1495
    %v1607 = vsel %vm1497, %v1606, %v1605
    %v1608 = vperm.slane %v1196, %v1499
    %v1609 = vsel %vm1501, %v1608, %v1607
    %v1610 = vperm.slane %v1198, %v1503
    %v1611 = vsel %vm1505, %v1610, %v1609
    %v1612 = vperm.slane %v1200, %v1507
    %v1613 = vsel %vm1509, %v1612, %v1611
    %v1614 = vperm.slane %v1202, %v1511
    %v1615 = vsel %vm1513, %v1614, %v1613
    %v1616 = vperm.slane %v1204, %v1515
    %v1617 = vsel %vm1517, %v1616, %v1615
    %v1618 = vperm.slane %v1206, %v1519
    %v1619 = vsel %vm1521, %v1618, %v1617
    %v1620 = vperm.slane %v1208, %v1523
    %v1621 = vsel %vm1525, %v1620, %v1619
    %v1622 = vperm.slane %v1210, %v1527
    %v1623 = vsel %vm1529, %v1622, %v1621
    %v1624 = vperm.slane %v1212, %v1340
    %v1625 = vperm.slane %v1214, %v1471
    %v1626 = vsel %vm1473, %v1625, %v1624
    %v1627 = vperm.slane %v1216, %v1475
    %v1628 = vsel %vm1477, %v1627, %v1626
    %v1629 = vperm.slane %v1218, %v1479
    %v1630 = vsel %vm1481, %v1629, %v1628
    %v1631 = vperm.slane %v1220, %v1483
    %v1632 = vsel %vm1485, %v1631, %v1630
    %v1633 = vperm.slane %v1222, %v1487
    %v1634 = vsel %vm1489, %v1633, %v1632
    %v1635 = vperm.slane %v1224, %v1491
    %v1636 = vsel %vm1493, %v1635, %v1634
    %v1637 = vperm.slane %v1226, %v1495
    %v1638 = vsel %vm1497, %v1637, %v1636
    %v1639 = vperm.slane %v1228, %v1499
    %v1640 = vsel %vm1501, %v1639, %v1638
    %v1641 = vperm.slane %v1230, %v1503
    %v1642 = vsel %vm1505, %v1641, %v1640
    %v1643 = vperm.slane %v1232, %v1507
    %v1644 = vsel %vm1509, %v1643, %v1642
    %v1645 = vperm.slane %v1234, %v1511
    %v1646 = vsel %vm1513, %v1645, %v1644
    %v1647 = vperm.slane %v1236, %v1515
    %v1648 = vsel %vm1517, %v1647, %v1646
    %v1649 = vperm.slane %v1238, %v1519
    %v1650 = vsel %vm1521, %v1649, %v1648
    %v1651 = vperm.slane %v1240, %v1523
    %v1652 = vsel %vm1525, %v1651, %v1650
    %v1653 = vperm.slane %v1242, %v1527
    %v1654 = vsel %vm1529, %v1653, %v1652
    %v1655 = vperm.slane %v1244, %v1340
    %v1656 = vperm.slane %v1246, %v1471
    %v1657 = vsel %vm1473, %v1656, %v1655
    %v1658 = vperm.slane %v1248, %v1475
    %v1659 = vsel %vm1477, %v1658, %v1657
    %v1660 = vperm.slane %v1250, %v1479
    %v1661 = vsel %vm1481, %v1660, %v1659
    %v1662 = vperm.slane %v1252, %v1483
    %v1663 = vsel %vm1485, %v1662, %v1661
    %v1664 = vperm.slane %v1254, %v1487
    %v1665 = vsel %vm1489, %v1664, %v1663
    %v1666 = vperm.slane %v1256, %v1491
    %v1667 = vsel %vm1493, %v1666, %v1665
    %v1668 = vperm.slane %v1258, %v1495
    %v1669 = vsel %vm1497, %v1668, %v1667
    %v1670 = vperm.slane %v1260, %v1499
    %v1671 = vsel %vm1501, %v1670, %v1669
    %v1672 = vperm.slane %v1262, %v1503
    %v1673 = vsel %vm1505, %v1672, %v1671
    %v1674 = vperm.slane %v1264, %v1507
    %v1675 = vsel %vm1509, %v1674, %v1673
    %v1676 = vperm.slane %v1266, %v1511
    %v1677 = vsel %vm1513, %v1676, %v1675
    %v1678 = vperm.slane %v1268, %v1515
    %v1679 = vsel %vm1517, %v1678, %v1677
    %v1680 = vperm.slane %v1270, %v1519
    %v1681 = vsel %vm1521, %v1680, %v1679
    %v1682 = vperm.slane %v1272, %v1523
    %v1683 = vsel %vm1525, %v1682, %v1681
    %v1684 = vperm.slane %v1274, %v1527
    %v1685 = vsel %vm1529, %v1684, %v1683
    %v1686 = vperm.slane %v1276, %v1340
    %v1687 = vperm.slane %v1278, %v1471
    %v1688 = vsel %vm1473, %v1687, %v1686
    %v1689 = vperm.slane %v1280, %v1475
    %v1690 = vsel %vm1477, %v1689, %v1688
    %v1691 = vperm.slane %v1282, %v1479
    %v1692 = vsel %vm1481, %v1691, %v1690
    %v1693 = vperm.slane %v1284, %v1483
    %v1694 = vsel %vm1485, %v1693, %v1692
    %v1695 = vperm.slane %v1286, %v1487
    %v1696 = vsel %vm1489, %v1695, %v1694
    %v1697 = vperm.slane %v1288, %v1491
    %v1698 = vsel %vm1493, %v1697, %v1696
    %v1699 = vperm.slane %v1290, %v1495
    %v1700 = vsel %vm1497, %v1699, %v1698
    %v1701 = vperm.slane %v1292, %v1499
    %v1702 = vsel %vm1501, %v1701, %v1700
    %v1703 = vperm.slane %v1294, %v1503
    %v1704 = vsel %vm1505, %v1703, %v1702
    %v1705 = vperm.slane %v1296, %v1507
    %v1706 = vsel %vm1509, %v1705, %v1704
    %v1707 = vperm.slane %v1298, %v1511
    %v1708 = vsel %vm1513, %v1707, %v1706
    %v1709 = vperm.slane %v1300, %v1515
    %v1710 = vsel %vm1517, %v1709, %v1708
    %v1711 = vperm.slane %v1302, %v1519
    %v1712 = vsel %vm1521, %v1711, %v1710
    %v1713 = vperm.slane %v1304, %v1523
    %v1714 = vsel %vm1525, %v1713, %v1712
    %v1715 = vperm.slane %v1306, %v1527
    %v1716 = vsel %vm1529, %v1715, %v1714
    %v1717 = vperm.slane %v1308, %v1340
    %v1718 = vperm.slane %v1310, %v1471
    %v1719 = vsel %vm1473, %v1718, %v1717
    %v1720 = vperm.slane %v1312, %v1475
    %v1721 = vsel %vm1477, %v1720, %v1719
    %v1722 = vperm.slane %v1314, %v1479
    %v1723 = vsel %vm1481, %v1722, %v1721
    %v1724 = vperm.slane %v1316, %v1483
    %v1725 = vsel %vm1485, %v1724, %v1723
    %v1726 = vperm.slane %v1318, %v1487
    %v1727 = vsel %vm1489, %v1726, %v1725
    %v1728 = vperm.slane %v1320, %v1491
    %v1729 = vsel %vm1493, %v1728, %v1727
    %v1730 = vperm.slane %v1322, %v1495
    %v1731 = vsel %vm1497, %v1730, %v1729
    %v1732 = vperm.slane %v1324, %v1499
    %v1733 = vsel %vm1501, %v1732, %v1731
    %v1734 = vperm.slane %v1326, %v1503
    %v1735 = vsel %vm1505, %v1734, %v1733
    %v1736 = vperm.slane %v1328, %v1507
    %v1737 = vsel %vm1509, %v1736, %v1735
    %v1738 = vperm.slane %v1330, %v1511
    %v1739 = vsel %vm1513, %v1738, %v1737
    %v1740 = vperm.slane %v1332, %v1515
    %v1741 = vsel %vm1517, %v1740, %v1739
    %v1742 = vperm.slane %v1334, %v1519
    %v1743 = vsel %vm1521, %v1742, %v1741
    %v1744 = vperm.slane %v1336, %v1523
    %v1745 = vsel %vm1525, %v1744, %v1743
    %v1746 = vperm.slane %v1338, %v1527
    %v1747 = vsel %vm1529, %v1746, %v1745
    %vm1748 = vcmask 1041409
    %v1749 = vsel %vm1748, %v1561, %v1530
    %vm1750 = vcmask 1042434
    %v1751 = vsel %vm1750, %v1592, %v1749
    %vm1752 = vcmask 1043459
    %v1753 = vsel %vm1752, %v1623, %v1751
    %vm1754 = vcmask 1044484
    %v1755 = vsel %vm1754, %v1654, %v1753
    %vm1756 = vcmask 1045509
    %v1757 = vsel %vm1756, %v1685, %v1755
    %vm1758 = vcmask 1046534
    %v1759 = vsel %vm1758, %v1716, %v1757
    %vm1760 = vcmask 1047559
    %v1761 = vsel %vm1760, %v1747, %v1759
    %v1763 = vsel %vm1341, %v1761, -1e+30
    %1764 = vmax.xlane.f32.xlu0 %v1763
    %v1765 = vpop.xlane.xlu0 %1764
    %v1766 = vsub.f32 %v1763, %v1765
    %v1767 = vmul.f32 %v1766, 1.442695
    %v1768 = vpow.pop %v1767
    %1769 = vadd.xlane.f32.xlu0 %v1768
    %v1770 = vpop.xlane.xlu0 %1769
    %v1771 = vrcp.pop %v1770
    %v1772 = vmul.f32 %v1770, %v1771
    %v1773 = vsub.f32 1.0, %v1772
    %v1774 = vmul.f32 %v1771, %v1773
    %v1775 = vadd.f32 %v1771, %v1774
    %vm1776 = vweird.f32 %v1770
    %vm1777 = vweird.f32 %v1771
    %vm1778 = vmor %vm1776, %vm1777
    %v1779 = vsel %vm1778, %v1771, %v1775
    %v1780 = vand.u32 2147483647, %v1770
    %vm1781 = vcmp.eq.f32.partialorder %v1780, 8.507059e+37
    %v1782 = vand.u32 %v1770, 2147483648
    %v1783 = vor.u32 1.1754944e-38, %v1782
    %v1784 = vsel %vm1781, %v1783, %v1779
    %v1785 = vmul.f32 %v1768, %v1784
    %1786 = vst [vmem:[#allocation10] sm:$0xff] %v1785
    // Predicated region
    $region42: #{tpu_custom_call.1} parent=1 // pred_check
      _
    $region43: #{tpu_custom_call.1} parent=1 // pred_check_branch
      %1788 = sbr.rel (0) target = $region45
    $region44: #{tpu_custom_call.1} parent=1 // pred_region
      %1790 = vsyncadd [#allocation4], 0
      %s1792 = sshll.u32 [#allocation10], 4
      %s1793 = int_to_ptr.vmem [resolvable:$true] %s1792
      %s1794 = sshll.u32 %s6, 4
      %s1795 = int_to_ptr.hbm [resolvable:$true] %s1794
      %1797 = dma.vmem_to_hbm [thread:$0]  %s1793, 128, %s1795, [#allocation4]
    $region45: #{tpu_custom_call.1} parent=1 // pred_fallthru
      _
    // Predicated region
    $region46: #{tpu_custom_call.1} parent=1 // pred_check
      _
    $region47: #{tpu_custom_call.1} parent=1 // pred_check_branch
      %1799 = sbr.rel (0) target = $region49
    $region48: #{tpu_custom_call.1} parent=1 // pred_region
      %1801 = dma.done [#allocation4], 128
    $region49: #{tpu_custom_call.1} parent=1 // pred_fallthru
      _
    %1802 = vsyncpa [#allocation3], 1
    %1803 = vsyncpa [#allocation6], 1
    %1804 = vsyncpa [#allocation9], 1
    %1805 = vsyncpa [#allocation4], 1

</llo_original>
